<compile_context>
chip_gen: v5e
topology: v5e:2x2
jax: 0.10.0
libtpu: 0.0.40
codegen_flags: <defaults>
</compile_context>

<pallas_src>
import math
import functools

import jax
import jax.numpy as jnp
from jax import lax
from jax.experimental import pallas as pl
from jax.experimental.pallas import tpu as pltpu

LN_EPS = 1e-5
_PAD = 16   # interior column offset inside the halo scratch (tile-aligned for f32 and bf16)


def _routing_kernel(x_ref, taps_ref, m_ref, gamma_ref, beta_ref, w_ref, b_ref,
                    out_ref, xpad_ref, *, H, W, L, BT, K, G, HR, NP, proportion,
                    conv_dtype):
    """One grid step handles G groups of BT batch elements folded into the lane axis.

    x_ref     : (G, H, W, L)      unpadded inputs, lane = bt*C + c
    taps_ref  : (9, L)            depthwise 3x3 taps, row = 3*dh + dw, tiled across BT
    m_ref     : (L, L)            block-diagonal group-mean matrix kron(I_BT, 1/C)
    gamma/beta: (1, L)            LayerNorm affine params, tiled across BT
    w_ref     : (L, NP)           block-diag fused [fc_alpha | fc_theta] weights, 0-padded
    b_ref     : (1, NP)           fused bias (alpha bias tiled, zeros elsewhere)
    out_ref   : (1, G, NP)        activated [alphas | angles | pad] per group
    xpad_ref  : (H+2, W+32, L)    VMEM scratch holding the spatially padded conv input
    """
    f32 = jnp.float32
    WP = W + 2 * _PAD

    # ---- hoisted per-step loads (review: JAX does not CSE broadcast_in_dim) ----
    taps_all = taps_ref[...].astype(conv_dtype)                      # (9, L)
    tap_b = [jnp.broadcast_to(taps_all[i], (1, W, L)) for i in range(9)]
    m = m_ref[...]
    gamma = gamma_ref[...]
    beta = beta_ref[...]

    # ---- build the conv halo in VMEM: zero only the border cells that are read ----
    # (re-done every step so correctness never depends on which core ran the last step)
    zrow = jnp.zeros((1, WP, L), conv_dtype)
    xpad_ref[0:1, :, :] = zrow                                       # top halo row
    xpad_ref[H + 1:H + 2, :, :] = zrow                               # bottom halo row
    zcol = jnp.zeros((H + 2, 8, L), conv_dtype)
    xpad_ref[:, _PAD - 8:_PAD, :] = zcol                             # contains halo col 15
    xpad_ref[:, _PAD + W:_PAD + W + 8, :] = zcol                     # contains halo col W+16

    feats = []
    for g in range(G):                          # static unroll over groups in this step
        # Tile-aligned interior copy (sublane offset 16 is aligned for f32 and bf16).
        xpad_ref[1:H + 1, _PAD:_PAD + W, :] = x_ref[g].astype(conv_dtype)

        pooled = jnp.zeros((1, L), f32)         # running avg-pool sum for this group
        r0 = 0
        while r0 < H:                           # static loop over HR-row output chunks
            # TODO(synk): switch to lax.fori_loop + pl.ds for H >> 32 (neutral at H=16).
            hr = min(HR, H - r0)

            # --- depthwise 3x3 conv (padding=1, no bias) for output rows [r0, r0+hr) ---
            # Outer loop over dw: one sublane-shifted slab load per dw.
            # Inner loop over dh: major-dim slices of the slab are free.
            acc = None
            for dw in range(3):
                slab = xpad_ref[r0:r0 + hr + 2, _PAD - 1 + dw:_PAD - 1 + dw + W, :]
                for dh in range(3):
                    term = slab[dh:dh + hr] * tap_b[3 * dh + dw]
                    acc = term if acc is None else acc + term
            # Free layout reinterpretation when W % 8 == 0 (relayout copy otherwise).
            y = acc.astype(f32).reshape(hr * W, L)

            # --- LayerNorm over each C-lane group (block-diag matmuls keep it lane-dense) ---
            mean_b = jnp.dot(y, m, preferred_element_type=f32)
            d = y - mean_b
            var_b = jnp.dot(d * d, m, preferred_element_type=f32)
            yn = d * lax.rsqrt(var_b + LN_EPS) * gamma + beta

            # --- ReLU + running global average pool ---
            pooled = pooled + jnp.sum(jnp.maximum(yn, 0.0), axis=0, keepdims=True)
            r0 += hr

        feats.append(pooled * (1.0 / float(H * W)))                  # (1, L)

    feat = feats[0] if G == 1 else jnp.concatenate(feats, axis=0)    # (G, L)

    # --- fused fc_alpha / fc_theta heads: one block-diagonal matmul, 128-lane output ---
    z = jnp.dot(feat, w_ref[...], preferred_element_type=f32) + b_ref[...]
    lane = lax.broadcasted_iota(jnp.int32, z.shape, 1)
    alphas = jax.nn.sigmoid(z)
    angles = (z / (1.0 + jnp.abs(z))) * proportion                   # Softsign * proportion
    res = jnp.where(lane < BT * K, alphas, angles)
    out_ref[...] = res.reshape(1, G, NP).astype(out_ref.dtype)


def _pick_conv_dtype():
    """bf16 conv MACs double VPU throughput on v6e/v7x; v5e/v4 have no bf16 VALU."""
    try:
        kind = jax.devices()[0].device_kind.lower()
    except Exception:
        return jnp.float32
    if ("v6" in kind) or ("v7" in kind) or ("7x" in kind):
        return jnp.bfloat16
    return jnp.float32


def routing_function(x_nchw, params, kernel_number, proportion, conv_dtype=None):
    """x_nchw: (B, C, H, W) float32 (PyTorch layout). Returns (alphas, angles): (B, K)."""
    B, C, H, W = x_nchw.shape
    K = kernel_number
    if conv_dtype is None:
        conv_dtype = _pick_conv_dtype()

    cdiv = lambda a, b: (a + b - 1) // b
    BT = max(1, 128 // C) if C <= 128 else 1           # batch elems folded into lanes
    L = BT * C
    NP = max(128, cdiv(2 * BT * K, 128) * 128)         # lane-dense fused-head width
    HR = max(1, min(H, 8192 // max(1, W * L)))         # register-resident row chunks

    B_pad = cdiv(B, BT) * BT
    nb = B_pad // BT                                   # number of lane-folded groups
    # Groups per grid step: aim for ~2 fat steps (one per v7x TensorCore) while keeping
    # the per-step x block small and the in-kernel unroll bounded.
    g_cap = max(1, min(8, (4 << 20) // max(1, H * W * L * 4)))
    G = max(1, min(cdiv(nb, 2), g_cap))
    nb2 = cdiv(nb, G)
    n_groups = nb2 * G
    B_pad2 = n_groups * BT

    x = x_nchw.astype(jnp.float32)
    if B_pad2 != B:
        x = jnp.pad(x, ((0, B_pad2 - B), (0, 0), (0, 0), (0, 0)))
    # NCHW -> (n_groups, H, W, BT*C): batch folded next to channels on the lane axis.
    # No spatial pad here: the 1-pixel conv halo is built inside the kernel (VMEM).
    x = x.reshape(n_groups, BT, C, H, W)
    x = jnp.transpose(x, (0, 3, 4, 1, 2)).reshape(n_groups, H, W, L)

    # --- parameter re-layout for the folded-lane kernel ---
    w = params["dwc_weight"]                                     # (C, 1, 3, 3)
    taps = jnp.transpose(w[:, 0], (1, 2, 0)).reshape(9, C)       # row = 3*dh + dw
    taps = jnp.tile(taps, (1, BT))                               # (9, L)
    gamma = jnp.tile(params["ln_gamma"].reshape(1, C), (1, BT))  # (1, L)
    beta = jnp.tile(params["ln_beta"].reshape(1, C), (1, BT))    # (1, L)
    eye = jnp.eye(BT, dtype=jnp.float32)
    m = jnp.kron(eye, jnp.full((C, C), 1.0 / C, jnp.float32))    # (L, L) group mean
    wa_bd = jnp.kron(eye, params["fc_alpha_weight"].T)           # (L, BT*K)
    wt_bd = jnp.kron(eye, params["fc_theta_weight"].T)           # (L, BT*K)
    w_all = jnp.concatenate([wa_bd, wt_bd], axis=1)              # (L, 2*BT*K)
    b_all = jnp.concatenate(
        [jnp.tile(params["fc_alpha_bias"].reshape(1, K), (1, BT)),
         jnp.zeros((1, BT * K), jnp.float32)], axis=1)           # (1, 2*BT*K)
    if NP > 2 * BT * K:   # zero-pad the head to 128 lanes -> unmasked lane-dense store
        w_all = jnp.pad(w_all, ((0, 0), (0, NP - 2 * BT * K)))
        b_all = jnp.pad(b_all, ((0, 0), (0, NP - 2 * BT * K)))

    def run(cdt):
        kernel = functools.partial(
            _routing_kernel, H=H, W=W, L=L, BT=BT, K=K, G=G, HR=HR, NP=NP,
            proportion=proportion, conv_dtype=cdt)
        grid_spec = pltpu.PrefetchScalarGridSpec(
            num_scalar_prefetch=0,
            grid=(nb2,),
            in_specs=[
                pl.BlockSpec((G, H, W, L), lambda b: (b, 0, 0, 0)),     # inputs
                pl.BlockSpec((9, L), lambda b: (0, 0)),                 # conv taps
                pl.BlockSpec((L, L), lambda b: (0, 0)),                 # group-mean mat
                pl.BlockSpec((1, L), lambda b: (0, 0)),                 # ln gamma
                pl.BlockSpec((1, L), lambda b: (0, 0)),                 # ln beta
                pl.BlockSpec((L, NP), lambda b: (0, 0)),                # fused FC W
                pl.BlockSpec((1, NP), lambda b: (0, 0)),                # fused FC bias
            ],
            out_specs=pl.BlockSpec((1, G, NP), lambda b: (b, 0, 0)),
            scratch_shapes=[pltpu.VMEM((H + 2, W + 2 * _PAD, L), cdt)],  # halo scratch
        )
        # VMEM guard: the x block is double-buffered; raise the scoped limit when it
        # grows past the ~32 MiB default (matters on v7x first).
        x_blk = G * H * W * L * 4
        est = (2 * x_blk
               + (H + 2) * (W + 2 * _PAD) * L * jnp.dtype(cdt).itemsize
               + (L * L + L * NP + 16 * L + 2 * NP) * 4
               + 2 * G * NP * 4)
        cp = dict(dimension_semantics=("parallel",))
        if est > 30 * 1024 * 1024:
            cp["vmem_limit_bytes"] = int(min(est * 5 // 4, 120 * 1024 * 1024))
        # TODO(synk): for H,W where a single (H,W,128) f32 block no longer fits v7x's
        # 64 MiB physical VMEM (~256x256), add a row-chunk grid axis with halo-aware
        # manual DMA instead of one whole-image block per group.
        return pl.pallas_call(
            kernel,
            out_shape=jax.ShapeDtypeStruct((nb2, G, NP), jnp.float32),
            grid_spec=grid_spec,
            compiler_params=pltpu.CompilerParams(**cp),
        )(x, taps, m, gamma, beta, w_all, b_all)

    try:
        out = run(conv_dtype)
    except Exception:
        if conv_dtype == jnp.float32:
            raise
        out = run(jnp.float32)   # safety net: fall back to the proven f32 conv path

    out = out.reshape(n_groups, NP)
    alphas = out[:, :BT * K].reshape(B_pad2, K)[:B]
    angles = out[:, BT * K:2 * BT * K].reshape(B_pad2, K)[:B]
    return alphas, angles


def init_params(key, in_channels, kernel_number):
    """Deterministic synthetic parameters matching the module's __init__ shapes."""
    C, K = in_channels, kernel_number
    k1, k2, k3, k4 = jax.random.split(key, 4)

    def trunc_normal(k, shape, std=0.02):
        return jnp.clip(jax.random.normal(k, shape) * std, -2.0 * std, 2.0 * std)

    params = {
        "dwc_weight": trunc_normal(k1, (C, 1, 3, 3)),               # depthwise conv
        "ln_gamma": jnp.ones((C,), jnp.float32),                    # LayerNorm weight
        "ln_beta": jnp.zeros((C,), jnp.float32),                    # LayerNorm bias
        "fc_alpha_weight": trunc_normal(k2, (K, C)),
        "fc_alpha_bias": (jax.random.uniform(k3, (K,)) - 0.5) * 2.0 / math.sqrt(C),
        "fc_theta_weight": trunc_normal(k4, (K, C)),
    }
    return {k: v.astype(jnp.float32) for k, v in params.items()}


def reference(x_nchw, params, proportion):
    """Pure-JAX reference replicating the PyTorch forward (eval mode, dropout=identity)."""
    B, C, H, W = x_nchw.shape
    xp = jnp.pad(x_nchw, ((0, 0), (0, 0), (1, 1), (1, 1)))
    w = params["dwc_weight"]                                        # (C, 1, 3, 3)
    y = jnp.zeros_like(x_nchw)
    for dh in range(3):
        for dw in range(3):
            y = y + xp[:, :, dh:dh + H, dw:dw + W] * w[:, 0, dh, dw][None, :, None, None]
    yt = jnp.transpose(y, (0, 2, 3, 1))                             # (B, H, W, C)
    mean = yt.mean(-1, keepdims=True)
    var = ((yt - mean) ** 2).mean(-1, keepdims=True)
    yn = (yt - mean) / jnp.sqrt(var + LN_EPS) * params["ln_gamma"] + params["ln_beta"]
    yr = jnp.maximum(yn, 0.0)
    feat = yr.mean((1, 2))                                          # global avg pool (B, C)
    a = jax.nn.sigmoid(feat @ params["fc_alpha_weight"].T + params["fc_alpha_bias"])
    t = feat @ params["fc_theta_weight"].T
    ang = t / (1.0 + jnp.abs(t)) * proportion
    return a, ang


if __name__ == "__main__":
    B, C, H, W, K = 8, 32, 16, 16, 8
    proportion = 40.0 / 180.0 * math.pi

    key = jax.random.PRNGKey(0)
    kx, kp = jax.random.split(key)
    x = jax.random.normal(kx, (B, C, H, W), dtype=jnp.float32)
    params = init_params(kp, C, K)

    conv_dtype = _pick_conv_dtype()
    alphas, angles = routing_function(x, params, K, proportion, conv_dtype=conv_dtype)
    jax.block_until_ready((alphas, angles))

    ra, rang = reference(x, params, proportion)
    tol = 1e-3 if conv_dtype == jnp.float32 else 2e-3   # bf16 conv MACs on v6e/v7x
    assert alphas.shape == (B, K) and angles.shape == (B, K)
    assert jnp.allclose(alphas, ra, atol=tol, rtol=tol), float(jnp.max(jnp.abs(alphas - ra)))
    assert jnp.allclose(angles, rang, atol=tol, rtol=tol), float(jnp.max(jnp.abs(angles - rang)))

    print("KERNEL_OK")
</pallas_src>

<mosaic_0001>
module attributes {stable_mosaic.version = 11 : i64} {
  func.func @_routing_kernel(%arg0: i32, %arg1: memref<1x16x16x128xf32, #tpu.memory_space<vmem>>, %arg2: memref<9x128xf32, #tpu.memory_space<vmem>>, %arg3: memref<128x128xf32, #tpu.memory_space<vmem>>, %arg4: memref<1x128xf32, #tpu.memory_space<vmem>>, %arg5: memref<1x128xf32, #tpu.memory_space<vmem>>, %arg6: memref<128x128xf32, #tpu.memory_space<vmem>>, %arg7: memref<1x128xf32, #tpu.memory_space<vmem>>, %arg8: memref<1x1x128xf32, #tpu.memory_space<vmem>>, %arg9: memref<18x48x128xf32, #tpu.memory_space<vmem>>) attributes {dimension_semantics = [#tpu.dimension_semantics<parallel>], iteration_bounds = array<i64: 2>, scalar_prefetch = 0 : i64, scratch_operands = 1 : i64, tpu.core_type = #tpu.core_type<tc>, window_params = [{transform_indices = @transform_0, window_bounds = array<i64: 1, 16, 16, 128>}, {pipeline_mode = #tpu.pipeline_mode<synchronous>, transform_indices = @transform_1, window_bounds = array<i64: 9, 128>}, {pipeline_mode = #tpu.pipeline_mode<synchronous>, transform_indices = @transform_2, window_bounds = array<i64: 128, 128>}, {pipeline_mode = #tpu.pipeline_mode<synchronous>, transform_indices = @transform_3, window_bounds = array<i64: 1, 128>}, {pipeline_mode = #tpu.pipeline_mode<synchronous>, transform_indices = @transform_4, window_bounds = array<i64: 1, 128>}, {pipeline_mode = #tpu.pipeline_mode<synchronous>, transform_indices = @transform_5, window_bounds = array<i64: 128, 128>}, {pipeline_mode = #tpu.pipeline_mode<synchronous>, transform_indices = @transform_6, window_bounds = array<i64: 1, 128>}, {transform_indices = @transform_7, window_bounds = array<i64: 1, 1, 128>}]} {
    %c0 = arith.constant 0 : index
    %c0_0 = arith.constant 0 : index
    %0 = vector.load %arg2[%c0, %c0_0] : memref<9x128xf32, #tpu.memory_space<vmem>>, vector<9x128xf32>
    %1 = vector.extract_strided_slice %0 {offsets = [0, 0], sizes = [1, 128], strides = [1, 1]} : vector<9x128xf32> to vector<1x128xf32>
    %2 = vector.shape_cast %1 : vector<1x128xf32> to vector<128xf32>
    %3 = vector.shape_cast %2 : vector<128xf32> to vector<1x1x128xf32>
    %4 = vector.broadcast %3 : vector<1x1x128xf32> to vector<1x16x128xf32>
    %5 = vector.extract_strided_slice %0 {offsets = [1, 0], sizes = [1, 128], strides = [1, 1]} : vector<9x128xf32> to vector<1x128xf32>
    %6 = vector.shape_cast %5 : vector<1x128xf32> to vector<128xf32>
    %7 = vector.shape_cast %6 : vector<128xf32> to vector<1x1x128xf32>
    %8 = vector.broadcast %7 : vector<1x1x128xf32> to vector<1x16x128xf32>
    %9 = vector.extract_strided_slice %0 {offsets = [2, 0], sizes = [1, 128], strides = [1, 1]} : vector<9x128xf32> to vector<1x128xf32>
    %10 = vector.shape_cast %9 : vector<1x128xf32> to vector<128xf32>
    %11 = vector.shape_cast %10 : vector<128xf32> to vector<1x1x128xf32>
    %12 = vector.broadcast %11 : vector<1x1x128xf32> to vector<1x16x128xf32>
    %13 = vector.extract_strided_slice %0 {offsets = [3, 0], sizes = [1, 128], strides = [1, 1]} : vector<9x128xf32> to vector<1x128xf32>
    %14 = vector.shape_cast %13 : vector<1x128xf32> to vector<128xf32>
    %15 = vector.shape_cast %14 : vector<128xf32> to vector<1x1x128xf32>
    %16 = vector.broadcast %15 : vector<1x1x128xf32> to vector<1x16x128xf32>
    %17 = vector.extract_strided_slice %0 {offsets = [4, 0], sizes = [1, 128], strides = [1, 1]} : vector<9x128xf32> to vector<1x128xf32>
    %18 = vector.shape_cast %17 : vector<1x128xf32> to vector<128xf32>
    %19 = vector.shape_cast %18 : vector<128xf32> to vector<1x1x128xf32>
    %20 = vector.broadcast %19 : vector<1x1x128xf32> to vector<1x16x128xf32>
    %21 = vector.extract_strided_slice %0 {offsets = [5, 0], sizes = [1, 128], strides = [1, 1]} : vector<9x128xf32> to vector<1x128xf32>
    %22 = vector.shape_cast %21 : vector<1x128xf32> to vector<128xf32>
    %23 = vector.shape_cast %22 : vector<128xf32> to vector<1x1x128xf32>
    %24 = vector.broadcast %23 : vector<1x1x128xf32> to vector<1x16x128xf32>
    %25 = vector.extract_strided_slice %0 {offsets = [6, 0], sizes = [1, 128], strides = [1, 1]} : vector<9x128xf32> to vector<1x128xf32>
    %26 = vector.shape_cast %25 : vector<1x128xf32> to vector<128xf32>
    %27 = vector.shape_cast %26 : vector<128xf32> to vector<1x1x128xf32>
    %28 = vector.broadcast %27 : vector<1x1x128xf32> to vector<1x16x128xf32>
    %29 = vector.extract_strided_slice %0 {offsets = [7, 0], sizes = [1, 128], strides = [1, 1]} : vector<9x128xf32> to vector<1x128xf32>
    %30 = vector.shape_cast %29 : vector<1x128xf32> to vector<128xf32>
    %31 = vector.shape_cast %30 : vector<128xf32> to vector<1x1x128xf32>
    %32 = vector.broadcast %31 : vector<1x1x128xf32> to vector<1x16x128xf32>
    %33 = vector.extract_strided_slice %0 {offsets = [8, 0], sizes = [1, 128], strides = [1, 1]} : vector<9x128xf32> to vector<1x128xf32>
    %34 = vector.shape_cast %33 : vector<1x128xf32> to vector<128xf32>
    %35 = vector.shape_cast %34 : vector<128xf32> to vector<1x1x128xf32>
    %36 = vector.broadcast %35 : vector<1x1x128xf32> to vector<1x16x128xf32>
    %c0_1 = arith.constant 0 : index
    %c0_2 = arith.constant 0 : index
    %37 = vector.load %arg3[%c0_1, %c0_2] : memref<128x128xf32, #tpu.memory_space<vmem>>, vector<128x128xf32>
    %c0_3 = arith.constant 0 : index
    %c0_4 = arith.constant 0 : index
    %38 = vector.load %arg4[%c0_3, %c0_4] : memref<1x128xf32, #tpu.memory_space<vmem>>, vector<1x128xf32>
    %c0_5 = arith.constant 0 : index
    %c0_6 = arith.constant 0 : index
    %39 = vector.load %arg5[%c0_5, %c0_6] : memref<1x128xf32, #tpu.memory_space<vmem>>, vector<1x128xf32>
    %cst = arith.constant 0.000000e+00 : f32
    %40 = vector.broadcast %cst : f32 to vector<1x48x128xf32>
    %c0_7 = arith.constant 0 : index
    %c0_8 = arith.constant 0 : index
    %c0_9 = arith.constant 0 : index
    %41 = vector.load %arg9[%c0_7, %c0_8, %c0_9] : memref<18x48x128xf32, #tpu.memory_space<vmem>>, vector<1x48x128xf32>
    tpu.vector_store %arg9[%c0_7, %c0_8, %c0_9], %40 {strides = array<i32>} : memref<18x48x128xf32, #tpu.memory_space<vmem>>, vector<1x48x128xf32>,
    %c17 = arith.constant 17 : index
    %c0_10 = arith.constant 0 : index
    %c0_11 = arith.constant 0 : index
    %42 = vector.load %arg9[%c17, %c0_10, %c0_11] : memref<18x48x128xf32, #tpu.memory_space<vmem>>, vector<1x48x128xf32>
    tpu.vector_store %arg9[%c17, %c0_10, %c0_11], %40 {strides = array<i32>} : memref<18x48x128xf32, #tpu.memory_space<vmem>>, vector<1x48x128xf32>,
    %cst_12 = arith.constant 0.000000e+00 : f32
    %43 = vector.broadcast %cst_12 : f32 to vector<18x8x128xf32>
    %c0_13 = arith.constant 0 : index
    %c8 = arith.constant 8 : index
    %c0_14 = arith.constant 0 : index
    %44 = vector.load %arg9[%c0_13, %c8, %c0_14] : memref<18x48x128xf32, #tpu.memory_space<vmem>>, vector<18x8x128xf32>
    tpu.vector_store %arg9[%c0_13, %c8, %c0_14], %43 {strides = array<i32>} : memref<18x48x128xf32, #tpu.memory_space<vmem>>, vector<18x8x128xf32>,
    %c0_15 = arith.constant 0 : index
    %c32 = arith.constant 32 : index
    %c0_16 = arith.constant 0 : index
    %45 = vector.load %arg9[%c0_15, %c32, %c0_16] : memref<18x48x128xf32, #tpu.memory_space<vmem>>, vector<18x8x128xf32>
    tpu.vector_store %arg9[%c0_15, %c32, %c0_16], %43 {strides = array<i32>} : memref<18x48x128xf32, #tpu.memory_space<vmem>>, vector<18x8x128xf32>,
    %c0_17 = arith.constant 0 : index
    %c0_18 = arith.constant 0 : index
    %c0_19 = arith.constant 0 : index
    %c0_20 = arith.constant 0 : index
    %46 = vector.load %arg1[%c0_17, %c0_18, %c0_19, %c0_20] : memref<1x16x16x128xf32, #tpu.memory_space<vmem>>, vector<1x16x16x128xf32>
    %47 = vector.shape_cast %46 : vector<1x16x16x128xf32> to vector<16x16x128xf32>
    %c1 = arith.constant 1 : index
    %c16 = arith.constant 16 : index
    %c0_21 = arith.constant 0 : index
    %48 = vector.load %arg9[%c1, %c16, %c0_21] : memref<18x48x128xf32, #tpu.memory_space<vmem>>, vector<16x16x128xf32>
    tpu.vector_store %arg9[%c1, %c16, %c0_21], %47 {strides = array<i32>} : memref<18x48x128xf32, #tpu.memory_space<vmem>>, vector<16x16x128xf32>,
    %cst_22 = arith.constant 0.000000e+00 : f32
    %49 = vector.broadcast %cst_22 : f32 to vector<1x128xf32>
    %c0_23 = arith.constant 0 : index
    %c15 = arith.constant 15 : index
    %c0_24 = arith.constant 0 : index
    %50 = vector.load %arg9[%c0_23, %c15, %c0_24] : memref<18x48x128xf32, #tpu.memory_space<vmem>>, vector<6x16x128xf32>
    %51 = vector.extract_strided_slice %50 {offsets = [0, 0, 0], sizes = [4, 16, 128], strides = [1, 1, 1]} : vector<6x16x128xf32> to vector<4x16x128xf32>
    %52 = vector.broadcast %4 : vector<1x16x128xf32> to vector<4x16x128xf32>
    %53 = arith.mulf %51, %52 : vector<4x16x128xf32>
    %54 = vector.extract_strided_slice %50 {offsets = [1, 0, 0], sizes = [4, 16, 128], strides = [1, 1, 1]} : vector<6x16x128xf32> to vector<4x16x128xf32>
    %55 = vector.broadcast %16 : vector<1x16x128xf32> to vector<4x16x128xf32>
    %56 = arith.mulf %54, %55 : vector<4x16x128xf32>
    %57 = arith.addf %53, %56 : vector<4x16x128xf32>
    %58 = vector.extract_strided_slice %50 {offsets = [2, 0, 0], sizes = [4, 16, 128], strides = [1, 1, 1]} : vector<6x16x128xf32> to vector<4x16x128xf32>
    %59 = vector.broadcast %28 : vector<1x16x128xf32> to vector<4x16x128xf32>
    %60 = arith.mulf %58, %59 : vector<4x16x128xf32>
    %61 = arith.addf %57, %60 : vector<4x16x128xf32>
    %c0_25 = arith.constant 0 : index
    %c16_26 = arith.constant 16 : index
    %c0_27 = arith.constant 0 : index
    %62 = vector.load %arg9[%c0_25, %c16_26, %c0_27] : memref<18x48x128xf32, #tpu.memory_space<vmem>>, vector<6x16x128xf32>
    %63 = vector.extract_strided_slice %62 {offsets = [0, 0, 0], sizes = [4, 16, 128], strides = [1, 1, 1]} : vector<6x16x128xf32> to vector<4x16x128xf32>
    %64 = vector.broadcast %8 : vector<1x16x128xf32> to vector<4x16x128xf32>
    %65 = arith.mulf %63, %64 : vector<4x16x128xf32>
    %66 = arith.addf %61, %65 : vector<4x16x128xf32>
    %67 = vector.extract_strided_slice %62 {offsets = [1, 0, 0], sizes = [4, 16, 128], strides = [1, 1, 1]} : vector<6x16x128xf32> to vector<4x16x128xf32>
    %68 = vector.broadcast %20 : vector<1x16x128xf32> to vector<4x16x128xf32>
    %69 = arith.mulf %67, %68 : vector<4x16x128xf32>
    %70 = arith.addf %66, %69 : vector<4x16x128xf32>
    %71 = vector.extract_strided_slice %62 {offsets = [2, 0, 0], sizes = [4, 16, 128], strides = [1, 1, 1]} : vector<6x16x128xf32> to vector<4x16x128xf32>
    %72 = vector.broadcast %32 : vector<1x16x128xf32> to vector<4x16x128xf32>
    %73 = arith.mulf %71, %72 : vector<4x16x128xf32>
    %74 = arith.addf %70, %73 : vector<4x16x128xf32>
    %c0_28 = arith.constant 0 : index
    %c17_29 = arith.constant 17 : index
    %c0_30 = arith.constant 0 : index
    %75 = vector.load %arg9[%c0_28, %c17_29, %c0_30] : memref<18x48x128xf32, #tpu.memory_space<vmem>>, vector<6x16x128xf32>
    %76 = vector.extract_strided_slice %75 {offsets = [0, 0, 0], sizes = [4, 16, 128], strides = [1, 1, 1]} : vector<6x16x128xf32> to vector<4x16x128xf32>
    %77 = vector.broadcast %12 : vector<1x16x128xf32> to vector<4x16x128xf32>
    %78 = arith.mulf %76, %77 : vector<4x16x128xf32>
    %79 = arith.addf %74, %78 : vector<4x16x128xf32>
    %80 = vector.extract_strided_slice %75 {offsets = [1, 0, 0], sizes = [4, 16, 128], strides = [1, 1, 1]} : vector<6x16x128xf32> to vector<4x16x128xf32>
    %81 = vector.broadcast %24 : vector<1x16x128xf32> to vector<4x16x128xf32>
    %82 = arith.mulf %80, %81 : vector<4x16x128xf32>
    %83 = arith.addf %79, %82 : vector<4x16x128xf32>
    %84 = vector.extract_strided_slice %75 {offsets = [2, 0, 0], sizes = [4, 16, 128], strides = [1, 1, 1]} : vector<6x16x128xf32> to vector<4x16x128xf32>
    %85 = vector.broadcast %36 : vector<1x16x128xf32> to vector<4x16x128xf32>
    %86 = arith.mulf %84, %85 : vector<4x16x128xf32>
    %87 = arith.addf %83, %86 : vector<4x16x128xf32>
    %88 = vector.shape_cast %87 : vector<4x16x128xf32> to vector<64x128xf32>
    %cst_31 = arith.constant dense<0.000000e+00> : vector<64x128xf32>
    %89 = tpu.matmul %88, %37, %cst_31 {dimension_numbers = #tpu.dot_dimension_numbers<[1], [0], [0], [1], [0, 0, 1, 1], [], []>} : vector<64x128xf32>, vector<128x128xf32>, vector<64x128xf32> -> vector<64x128xf32>
    %90 = arith.subf %88, %89 : vector<64x128xf32>
    %91 = arith.mulf %90, %90 : vector<64x128xf32>
    %cst_32 = arith.constant dense<0.000000e+00> : vector<64x128xf32>
    %92 = tpu.matmul %91, %37, %cst_32 {dimension_numbers = #tpu.dot_dimension_numbers<[1], [0], [0], [1], [0, 0, 1, 1], [], []>} : vector<64x128xf32>, vector<128x128xf32>, vector<64x128xf32> -> vector<64x128xf32>
    %cst_33 = arith.constant 9.99999974E-6 : f32
    %93 = vector.broadcast %cst_33 : f32 to vector<64x128xf32>
    %94 = arith.addf %92, %93 : vector<64x128xf32>
    %95 = math.rsqrt %94 : vector<64x128xf32>
    %96 = arith.mulf %90, %95 : vector<64x128xf32>
    %97 = vector.broadcast %38 : vector<1x128xf32> to vector<64x128xf32>
    %98 = arith.mulf %96, %97 : vector<64x128xf32>
    %99 = vector.broadcast %39 : vector<1x128xf32> to vector<64x128xf32>
    %100 = arith.addf %98, %99 : vector<64x128xf32>
    %cst_34 = arith.constant 0.000000e+00 : f32
    %101 = vector.broadcast %cst_34 : f32 to vector<64x128xf32>
    %102 = arith.maximumf %100, %101 : vector<64x128xf32>
    %cst_35 = arith.constant dense<0.000000e+00> : vector<128xf32>
    %103 = vector.multi_reduction <add>, %102, %cst_35 [0] : vector<64x128xf32> to vector<128xf32>
    %104 = vector.shape_cast %103 : vector<128xf32> to vector<1x128xf32>
    %105 = arith.addf %49, %104 : vector<1x128xf32>
    %c4 = arith.constant 4 : index
    %c15_36 = arith.constant 15 : index
    %c0_37 = arith.constant 0 : index
    %106 = vector.load %arg9[%c4, %c15_36, %c0_37] : memref<18x48x128xf32, #tpu.memory_space<vmem>>, vector<6x16x128xf32>
    %107 = vector.extract_strided_slice %106 {offsets = [0, 0, 0], sizes = [4, 16, 128], strides = [1, 1, 1]} : vector<6x16x128xf32> to vector<4x16x128xf32>
    %108 = vector.broadcast %4 : vector<1x16x128xf32> to vector<4x16x128xf32>
    %109 = arith.mulf %107, %108 : vector<4x16x128xf32>
    %110 = vector.extract_strided_slice %106 {offsets = [1, 0, 0], sizes = [4, 16, 128], strides = [1, 1, 1]} : vector<6x16x128xf32> to vector<4x16x128xf32>
    %111 = vector.broadcast %16 : vector<1x16x128xf32> to vector<4x16x128xf32>
    %112 = arith.mulf %110, %111 : vector<4x16x128xf32>
    %113 = arith.addf %109, %112 : vector<4x16x128xf32>
    %114 = vector.extract_strided_slice %106 {offsets = [2, 0, 0], sizes = [4, 16, 128], strides = [1, 1, 1]} : vector<6x16x128xf32> to vector<4x16x128xf32>
    %115 = vector.broadcast %28 : vector<1x16x128xf32> to vector<4x16x128xf32>
    %116 = arith.mulf %114, %115 : vector<4x16x128xf32>
    %117 = arith.addf %113, %116 : vector<4x16x128xf32>
    %c4_38 = arith.constant 4 : index
    %c16_39 = arith.constant 16 : index
    %c0_40 = arith.constant 0 : index
    %118 = vector.load %arg9[%c4_38, %c16_39, %c0_40] : memref<18x48x128xf32, #tpu.memory_space<vmem>>, vector<6x16x128xf32>
    %119 = vector.extract_strided_slice %118 {offsets = [0, 0, 0], sizes = [4, 16, 128], strides = [1, 1, 1]} : vector<6x16x128xf32> to vector<4x16x128xf32>
    %120 = vector.broadcast %8 : vector<1x16x128xf32> to vector<4x16x128xf32>
    %121 = arith.mulf %119, %120 : vector<4x16x128xf32>
    %122 = arith.addf %117, %121 : vector<4x16x128xf32>
    %123 = vector.extract_strided_slice %118 {offsets = [1, 0, 0], sizes = [4, 16, 128], strides = [1, 1, 1]} : vector<6x16x128xf32> to vector<4x16x128xf32>
    %124 = vector.broadcast %20 : vector<1x16x128xf32> to vector<4x16x128xf32>
    %125 = arith.mulf %123, %124 : vector<4x16x128xf32>
    %126 = arith.addf %122, %125 : vector<4x16x128xf32>
    %127 = vector.extract_strided_slice %118 {offsets = [2, 0, 0], sizes = [4, 16, 128], strides = [1, 1, 1]} : vector<6x16x128xf32> to vector<4x16x128xf32>
    %128 = vector.broadcast %32 : vector<1x16x128xf32> to vector<4x16x128xf32>
    %129 = arith.mulf %127, %128 : vector<4x16x128xf32>
    %130 = arith.addf %126, %129 : vector<4x16x128xf32>
    %c4_41 = arith.constant 4 : index
    %c17_42 = arith.constant 17 : index
    %c0_43 = arith.constant 0 : index
    %131 = vector.load %arg9[%c4_41, %c17_42, %c0_43] : memref<18x48x128xf32, #tpu.memory_space<vmem>>, vector<6x16x128xf32>
    %132 = vector.extract_strided_slice %131 {offsets = [0, 0, 0], sizes = [4, 16, 128], strides = [1, 1, 1]} : vector<6x16x128xf32> to vector<4x16x128xf32>
    %133 = vector.broadcast %12 : vector<1x16x128xf32> to vector<4x16x128xf32>
    %134 = arith.mulf %132, %133 : vector<4x16x128xf32>
    %135 = arith.addf %130, %134 : vector<4x16x128xf32>
    %136 = vector.extract_strided_slice %131 {offsets = [1, 0, 0], sizes = [4, 16, 128], strides = [1, 1, 1]} : vector<6x16x128xf32> to vector<4x16x128xf32>
    %137 = vector.broadcast %24 : vector<1x16x128xf32> to vector<4x16x128xf32>
    %138 = arith.mulf %136, %137 : vector<4x16x128xf32>
    %139 = arith.addf %135, %138 : vector<4x16x128xf32>
    %140 = vector.extract_strided_slice %131 {offsets = [2, 0, 0], sizes = [4, 16, 128], strides = [1, 1, 1]} : vector<6x16x128xf32> to vector<4x16x128xf32>
    %141 = vector.broadcast %36 : vector<1x16x128xf32> to vector<4x16x128xf32>
    %142 = arith.mulf %140, %141 : vector<4x16x128xf32>
    %143 = arith.addf %139, %142 : vector<4x16x128xf32>
    %144 = vector.shape_cast %143 : vector<4x16x128xf32> to vector<64x128xf32>
    %cst_44 = arith.constant dense<0.000000e+00> : vector<64x128xf32>
    %145 = tpu.matmul %144, %37, %cst_44 {dimension_numbers = #tpu.dot_dimension_numbers<[1], [0], [0], [1], [0, 0, 1, 1], [], []>} : vector<64x128xf32>, vector<128x128xf32>, vector<64x128xf32> -> vector<64x128xf32>
    %146 = arith.subf %144, %145 : vector<64x128xf32>
    %147 = arith.mulf %146, %146 : vector<64x128xf32>
    %cst_45 = arith.constant dense<0.000000e+00> : vector<64x128xf32>
    %148 = tpu.matmul %147, %37, %cst_45 {dimension_numbers = #tpu.dot_dimension_numbers<[1], [0], [0], [1], [0, 0, 1, 1], [], []>} : vector<64x128xf32>, vector<128x128xf32>, vector<64x128xf32> -> vector<64x128xf32>
    %cst_46 = arith.constant 9.99999974E-6 : f32
    %149 = vector.broadcast %cst_46 : f32 to vector<64x128xf32>
    %150 = arith.addf %148, %149 : vector<64x128xf32>
    %151 = math.rsqrt %150 : vector<64x128xf32>
    %152 = arith.mulf %146, %151 : vector<64x128xf32>
    %153 = vector.broadcast %38 : vector<1x128xf32> to vector<64x128xf32>
    %154 = arith.mulf %152, %153 : vector<64x128xf32>
    %155 = vector.broadcast %39 : vector<1x128xf32> to vector<64x128xf32>
    %156 = arith.addf %154, %155 : vector<64x128xf32>
    %cst_47 = arith.constant 0.000000e+00 : f32
    %157 = vector.broadcast %cst_47 : f32 to vector<64x128xf32>
    %158 = arith.maximumf %156, %157 : vector<64x128xf32>
    %cst_48 = arith.constant dense<0.000000e+00> : vector<128xf32>
    %159 = vector.multi_reduction <add>, %158, %cst_48 [0] : vector<64x128xf32> to vector<128xf32>
    %160 = vector.shape_cast %159 : vector<128xf32> to vector<1x128xf32>
    %161 = arith.addf %105, %160 : vector<1x128xf32>
    %c8_49 = arith.constant 8 : index
    %c15_50 = arith.constant 15 : index
    %c0_51 = arith.constant 0 : index
    %162 = vector.load %arg9[%c8_49, %c15_50, %c0_51] : memref<18x48x128xf32, #tpu.memory_space<vmem>>, vector<6x16x128xf32>
    %163 = vector.extract_strided_slice %162 {offsets = [0, 0, 0], sizes = [4, 16, 128], strides = [1, 1, 1]} : vector<6x16x128xf32> to vector<4x16x128xf32>
    %164 = vector.broadcast %4 : vector<1x16x128xf32> to vector<4x16x128xf32>
    %165 = arith.mulf %163, %164 : vector<4x16x128xf32>
    %166 = vector.extract_strided_slice %162 {offsets = [1, 0, 0], sizes = [4, 16, 128], strides = [1, 1, 1]} : vector<6x16x128xf32> to vector<4x16x128xf32>
    %167 = vector.broadcast %16 : vector<1x16x128xf32> to vector<4x16x128xf32>
    %168 = arith.mulf %166, %167 : vector<4x16x128xf32>
    %169 = arith.addf %165, %168 : vector<4x16x128xf32>
    %170 = vector.extract_strided_slice %162 {offsets = [2, 0, 0], sizes = [4, 16, 128], strides = [1, 1, 1]} : vector<6x16x128xf32> to vector<4x16x128xf32>
    %171 = vector.broadcast %28 : vector<1x16x128xf32> to vector<4x16x128xf32>
    %172 = arith.mulf %170, %171 : vector<4x16x128xf32>
    %173 = arith.addf %169, %172 : vector<4x16x128xf32>
    %c8_52 = arith.constant 8 : index
    %c16_53 = arith.constant 16 : index
    %c0_54 = arith.constant 0 : index
    %174 = vector.load %arg9[%c8_52, %c16_53, %c0_54] : memref<18x48x128xf32, #tpu.memory_space<vmem>>, vector<6x16x128xf32>
    %175 = vector.extract_strided_slice %174 {offsets = [0, 0, 0], sizes = [4, 16, 128], strides = [1, 1, 1]} : vector<6x16x128xf32> to vector<4x16x128xf32>
    %176 = vector.broadcast %8 : vector<1x16x128xf32> to vector<4x16x128xf32>
    %177 = arith.mulf %175, %176 : vector<4x16x128xf32>
    %178 = arith.addf %173, %177 : vector<4x16x128xf32>
    %179 = vector.extract_strided_slice %174 {offsets = [1, 0, 0], sizes = [4, 16, 128], strides = [1, 1, 1]} : vector<6x16x128xf32> to vector<4x16x128xf32>
    %180 = vector.broadcast %20 : vector<1x16x128xf32> to vector<4x16x128xf32>
    %181 = arith.mulf %179, %180 : vector<4x16x128xf32>
    %182 = arith.addf %178, %181 : vector<4x16x128xf32>
    %183 = vector.extract_strided_slice %174 {offsets = [2, 0, 0], sizes = [4, 16, 128], strides = [1, 1, 1]} : vector<6x16x128xf32> to vector<4x16x128xf32>
    %184 = vector.broadcast %32 : vector<1x16x128xf32> to vector<4x16x128xf32>
    %185 = arith.mulf %183, %184 : vector<4x16x128xf32>
    %186 = arith.addf %182, %185 : vector<4x16x128xf32>
    %c8_55 = arith.constant 8 : index
    %c17_56 = arith.constant 17 : index
    %c0_57 = arith.constant 0 : index
    %187 = vector.load %arg9[%c8_55, %c17_56, %c0_57] : memref<18x48x128xf32, #tpu.memory_space<vmem>>, vector<6x16x128xf32>
    %188 = vector.extract_strided_slice %187 {offsets = [0, 0, 0], sizes = [4, 16, 128], strides = [1, 1, 1]} : vector<6x16x128xf32> to vector<4x16x128xf32>
    %189 = vector.broadcast %12 : vector<1x16x128xf32> to vector<4x16x128xf32>
    %190 = arith.mulf %188, %189 : vector<4x16x128xf32>
    %191 = arith.addf %186, %190 : vector<4x16x128xf32>
    %192 = vector.extract_strided_slice %187 {offsets = [1, 0, 0], sizes = [4, 16, 128], strides = [1, 1, 1]} : vector<6x16x128xf32> to vector<4x16x128xf32>
    %193 = vector.broadcast %24 : vector<1x16x128xf32> to vector<4x16x128xf32>
    %194 = arith.mulf %192, %193 : vector<4x16x128xf32>
    %195 = arith.addf %191, %194 : vector<4x16x128xf32>
    %196 = vector.extract_strided_slice %187 {offsets = [2, 0, 0], sizes = [4, 16, 128], strides = [1, 1, 1]} : vector<6x16x128xf32> to vector<4x16x128xf32>
    %197 = vector.broadcast %36 : vector<1x16x128xf32> to vector<4x16x128xf32>
    %198 = arith.mulf %196, %197 : vector<4x16x128xf32>
    %199 = arith.addf %195, %198 : vector<4x16x128xf32>
    %200 = vector.shape_cast %199 : vector<4x16x128xf32> to vector<64x128xf32>
    %cst_58 = arith.constant dense<0.000000e+00> : vector<64x128xf32>
    %201 = tpu.matmul %200, %37, %cst_58 {dimension_numbers = #tpu.dot_dimension_numbers<[1], [0], [0], [1], [0, 0, 1, 1], [], []>} : vector<64x128xf32>, vector<128x128xf32>, vector<64x128xf32> -> vector<64x128xf32>
    %202 = arith.subf %200, %201 : vector<64x128xf32>
    %203 = arith.mulf %202, %202 : vector<64x128xf32>
    %cst_59 = arith.constant dense<0.000000e+00> : vector<64x128xf32>
    %204 = tpu.matmul %203, %37, %cst_59 {dimension_numbers = #tpu.dot_dimension_numbers<[1], [0], [0], [1], [0, 0, 1, 1], [], []>} : vector<64x128xf32>, vector<128x128xf32>, vector<64x128xf32> -> vector<64x128xf32>
    %cst_60 = arith.constant 9.99999974E-6 : f32
    %205 = vector.broadcast %cst_60 : f32 to vector<64x128xf32>
    %206 = arith.addf %204, %205 : vector<64x128xf32>
    %207 = math.rsqrt %206 : vector<64x128xf32>
    %208 = arith.mulf %202, %207 : vector<64x128xf32>
    %209 = vector.broadcast %38 : vector<1x128xf32> to vector<64x128xf32>
    %210 = arith.mulf %208, %209 : vector<64x128xf32>
    %211 = vector.broadcast %39 : vector<1x128xf32> to vector<64x128xf32>
    %212 = arith.addf %210, %211 : vector<64x128xf32>
    %cst_61 = arith.constant 0.000000e+00 : f32
    %213 = vector.broadcast %cst_61 : f32 to vector<64x128xf32>
    %214 = arith.maximumf %212, %213 : vector<64x128xf32>
    %cst_62 = arith.constant dense<0.000000e+00> : vector<128xf32>
    %215 = vector.multi_reduction <add>, %214, %cst_62 [0] : vector<64x128xf32> to vector<128xf32>
    %216 = vector.shape_cast %215 : vector<128xf32> to vector<1x128xf32>
    %217 = arith.addf %161, %216 : vector<1x128xf32>
    %c12 = arith.constant 12 : index
    %c15_63 = arith.constant 15 : index
    %c0_64 = arith.constant 0 : index
    %218 = vector.load %arg9[%c12, %c15_63, %c0_64] : memref<18x48x128xf32, #tpu.memory_space<vmem>>, vector<6x16x128xf32>
    %219 = vector.extract_strided_slice %218 {offsets = [0, 0, 0], sizes = [4, 16, 128], strides = [1, 1, 1]} : vector<6x16x128xf32> to vector<4x16x128xf32>
    %220 = vector.broadcast %4 : vector<1x16x128xf32> to vector<4x16x128xf32>
    %221 = arith.mulf %219, %220 : vector<4x16x128xf32>
    %222 = vector.extract_strided_slice %218 {offsets = [1, 0, 0], sizes = [4, 16, 128], strides = [1, 1, 1]} : vector<6x16x128xf32> to vector<4x16x128xf32>
    %223 = vector.broadcast %16 : vector<1x16x128xf32> to vector<4x16x128xf32>
    %224 = arith.mulf %222, %223 : vector<4x16x128xf32>
    %225 = arith.addf %221, %224 : vector<4x16x128xf32>
    %226 = vector.extract_strided_slice %218 {offsets = [2, 0, 0], sizes = [4, 16, 128], strides = [1, 1, 1]} : vector<6x16x128xf32> to vector<4x16x128xf32>
    %227 = vector.broadcast %28 : vector<1x16x128xf32> to vector<4x16x128xf32>
    %228 = arith.mulf %226, %227 : vector<4x16x128xf32>
    %229 = arith.addf %225, %228 : vector<4x16x128xf32>
    %c12_65 = arith.constant 12 : index
    %c16_66 = arith.constant 16 : index
    %c0_67 = arith.constant 0 : index
    %230 = vector.load %arg9[%c12_65, %c16_66, %c0_67] : memref<18x48x128xf32, #tpu.memory_space<vmem>>, vector<6x16x128xf32>
    %231 = vector.extract_strided_slice %230 {offsets = [0, 0, 0], sizes = [4, 16, 128], strides = [1, 1, 1]} : vector<6x16x128xf32> to vector<4x16x128xf32>
    %232 = vector.broadcast %8 : vector<1x16x128xf32> to vector<4x16x128xf32>
    %233 = arith.mulf %231, %232 : vector<4x16x128xf32>
    %234 = arith.addf %229, %233 : vector<4x16x128xf32>
    %235 = vector.extract_strided_slice %230 {offsets = [1, 0, 0], sizes = [4, 16, 128], strides = [1, 1, 1]} : vector<6x16x128xf32> to vector<4x16x128xf32>
    %236 = vector.broadcast %20 : vector<1x16x128xf32> to vector<4x16x128xf32>
    %237 = arith.mulf %235, %236 : vector<4x16x128xf32>
    %238 = arith.addf %234, %237 : vector<4x16x128xf32>
    %239 = vector.extract_strided_slice %230 {offsets = [2, 0, 0], sizes = [4, 16, 128], strides = [1, 1, 1]} : vector<6x16x128xf32> to vector<4x16x128xf32>
    %240 = vector.broadcast %32 : vector<1x16x128xf32> to vector<4x16x128xf32>
    %241 = arith.mulf %239, %240 : vector<4x16x128xf32>
    %242 = arith.addf %238, %241 : vector<4x16x128xf32>
    %c12_68 = arith.constant 12 : index
    %c17_69 = arith.constant 17 : index
    %c0_70 = arith.constant 0 : index
    %243 = vector.load %arg9[%c12_68, %c17_69, %c0_70] : memref<18x48x128xf32, #tpu.memory_space<vmem>>, vector<6x16x128xf32>
    %244 = vector.extract_strided_slice %243 {offsets = [0, 0, 0], sizes = [4, 16, 128], strides = [1, 1, 1]} : vector<6x16x128xf32> to vector<4x16x128xf32>
    %245 = vector.broadcast %12 : vector<1x16x128xf32> to vector<4x16x128xf32>
    %246 = arith.mulf %244, %245 : vector<4x16x128xf32>
    %247 = arith.addf %242, %246 : vector<4x16x128xf32>
    %248 = vector.extract_strided_slice %243 {offsets = [1, 0, 0], sizes = [4, 16, 128], strides = [1, 1, 1]} : vector<6x16x128xf32> to vector<4x16x128xf32>
    %249 = vector.broadcast %24 : vector<1x16x128xf32> to vector<4x16x128xf32>
    %250 = arith.mulf %248, %249 : vector<4x16x128xf32>
    %251 = arith.addf %247, %250 : vector<4x16x128xf32>
    %252 = vector.extract_strided_slice %243 {offsets = [2, 0, 0], sizes = [4, 16, 128], strides = [1, 1, 1]} : vector<6x16x128xf32> to vector<4x16x128xf32>
    %253 = vector.broadcast %36 : vector<1x16x128xf32> to vector<4x16x128xf32>
    %254 = arith.mulf %252, %253 : vector<4x16x128xf32>
    %255 = arith.addf %251, %254 : vector<4x16x128xf32>
    %256 = vector.shape_cast %255 : vector<4x16x128xf32> to vector<64x128xf32>
    %cst_71 = arith.constant dense<0.000000e+00> : vector<64x128xf32>
    %257 = tpu.matmul %256, %37, %cst_71 {dimension_numbers = #tpu.dot_dimension_numbers<[1], [0], [0], [1], [0, 0, 1, 1], [], []>} : vector<64x128xf32>, vector<128x128xf32>, vector<64x128xf32> -> vector<64x128xf32>
    %258 = arith.subf %256, %257 : vector<64x128xf32>
    %259 = arith.mulf %258, %258 : vector<64x128xf32>
    %cst_72 = arith.constant dense<0.000000e+00> : vector<64x128xf32>
    %260 = tpu.matmul %259, %37, %cst_72 {dimension_numbers = #tpu.dot_dimension_numbers<[1], [0], [0], [1], [0, 0, 1, 1], [], []>} : vector<64x128xf32>, vector<128x128xf32>, vector<64x128xf32> -> vector<64x128xf32>
    %cst_73 = arith.constant 9.99999974E-6 : f32
    %261 = vector.broadcast %cst_73 : f32 to vector<64x128xf32>
    %262 = arith.addf %260, %261 : vector<64x128xf32>
    %263 = math.rsqrt %262 : vector<64x128xf32>
    %264 = arith.mulf %258, %263 : vector<64x128xf32>
    %265 = vector.broadcast %38 : vector<1x128xf32> to vector<64x128xf32>
    %266 = arith.mulf %264, %265 : vector<64x128xf32>
    %267 = vector.broadcast %39 : vector<1x128xf32> to vector<64x128xf32>
    %268 = arith.addf %266, %267 : vector<64x128xf32>
    %cst_74 = arith.constant 0.000000e+00 : f32
    %269 = vector.broadcast %cst_74 : f32 to vector<64x128xf32>
    %270 = arith.maximumf %268, %269 : vector<64x128xf32>
    %cst_75 = arith.constant dense<0.000000e+00> : vector<128xf32>
    %271 = vector.multi_reduction <add>, %270, %cst_75 [0] : vector<64x128xf32> to vector<128xf32>
    %272 = vector.shape_cast %271 : vector<128xf32> to vector<1x128xf32>
    %273 = arith.addf %217, %272 : vector<1x128xf32>
    %cst_76 = arith.constant 3.906250e-03 : f32
    %274 = vector.broadcast %cst_76 : f32 to vector<1x128xf32>
    %275 = arith.mulf %273, %274 : vector<1x128xf32>
    %c0_77 = arith.constant 0 : index
    %c0_78 = arith.constant 0 : index
    %276 = vector.load %arg6[%c0_77, %c0_78] : memref<128x128xf32, #tpu.memory_space<vmem>>, vector<128x128xf32>
    %cst_79 = arith.constant dense<0.000000e+00> : vector<1x128xf32>
    %277 = tpu.matmul %275, %276, %cst_79 {dimension_numbers = #tpu.dot_dimension_numbers<[1], [0], [0], [1], [0, 0, 1, 1], [], []>} : vector<1x128xf32>, vector<128x128xf32>, vector<1x128xf32> -> vector<1x128xf32>
    %c0_80 = arith.constant 0 : index
    %c0_81 = arith.constant 0 : index
    %278 = vector.load %arg7[%c0_80, %c0_81] : memref<1x128xf32, #tpu.memory_space<vmem>>, vector<1x128xf32>
    %279 = arith.addf %277, %278 : vector<1x128xf32>
    %280 = tpu.iota {dimensions = array<i32: 1>} : vector<1x128xi32>
    %281 = arith.negf %279 : vector<1x128xf32>
    %282 = math.exp %281 : vector<1x128xf32>
    %cst_82 = arith.constant 1.000000e+00 : f32
    %283 = vector.broadcast %cst_82 : f32 to vector<1x128xf32>
    %284 = arith.addf %283, %282 : vector<1x128xf32>
    %285 = arith.divf %283, %284 : vector<1x128xf32>
    %286 = math.absf %279 : vector<1x128xf32>
    %cst_83 = arith.constant 1.000000e+00 : f32
    %287 = vector.broadcast %cst_83 : f32 to vector<1x128xf32>
    %288 = arith.addf %287, %286 : vector<1x128xf32>
    %289 = arith.divf %279, %288 : vector<1x128xf32>
    %cst_84 = arith.constant 0.69813168 : f32
    %290 = vector.broadcast %cst_84 : f32 to vector<1x128xf32>
    %291 = arith.mulf %289, %290 : vector<1x128xf32>
    %c32_i32 = arith.constant 32 : i32
    %292 = vector.broadcast %c32_i32 : i32 to vector<1x128xi32>
    %293 = arith.cmpi slt, %280, %292 : vector<1x128xi32>
    %294 = arith.select %293, %285, %291 : vector<1x128xi1>, vector<1x128xf32>
    %295 = vector.shape_cast %294 : vector<1x128xf32> to vector<1x1x128xf32>
    %c0_85 = arith.constant 0 : index
    %c0_86 = arith.constant 0 : index
    %c0_87 = arith.constant 0 : index
    %296 = vector.load %arg8[%c0_85, %c0_86, %c0_87] : memref<1x1x128xf32, #tpu.memory_space<vmem>>, vector<1x1x128xf32>
    tpu.vector_store %arg8[%c0_85, %c0_86, %c0_87], %295 {strides = array<i32>} : memref<1x1x128xf32, #tpu.memory_space<vmem>>, vector<1x1x128xf32>,
    return
  }
  func.func @transform_0(%arg0: i32) -> (i32, i32, i32, i32) {
    %c0_i32 = arith.constant 0 : i32
    %c0_i32_0 = arith.constant 0 : i32
    %c0_i32_1 = arith.constant 0 : i32
    %c0_i32_2 = arith.constant 0 : i32
    return %arg0, %c0_i32, %c0_i32_0, %c0_i32_1 : i32, i32, i32, i32
  }
  func.func @transform_1(%arg0: i32) -> (i32, i32) {
    %c0_i32 = arith.constant 0 : i32
    %c0_i32_0 = arith.constant 0 : i32
    %c0_i32_1 = arith.constant 0 : i32
    return %c0_i32, %c0_i32_0 : i32, i32
  }
  func.func @transform_2(%arg0: i32) -> (i32, i32) {
    %c0_i32 = arith.constant 0 : i32
    %c0_i32_0 = arith.constant 0 : i32
    %c0_i32_1 = arith.constant 0 : i32
    return %c0_i32, %c0_i32_0 : i32, i32
  }
  func.func @transform_3(%arg0: i32) -> (i32, i32) {
    %c0_i32 = arith.constant 0 : i32
    %c0_i32_0 = arith.constant 0 : i32
    %c0_i32_1 = arith.constant 0 : i32
    return %c0_i32, %c0_i32_0 : i32, i32
  }
  func.func @transform_4(%arg0: i32) -> (i32, i32) {
    %c0_i32 = arith.constant 0 : i32
    %c0_i32_0 = arith.constant 0 : i32
    %c0_i32_1 = arith.constant 0 : i32
    return %c0_i32, %c0_i32_0 : i32, i32
  }
  func.func @transform_5(%arg0: i32) -> (i32, i32) {
    %c0_i32 = arith.constant 0 : i32
    %c0_i32_0 = arith.constant 0 : i32
    %c0_i32_1 = arith.constant 0 : i32
    return %c0_i32, %c0_i32_0 : i32, i32
  }
  func.func @transform_6(%arg0: i32) -> (i32, i32) {
    %c0_i32 = arith.constant 0 : i32
    %c0_i32_0 = arith.constant 0 : i32
    %c0_i32_1 = arith.constant 0 : i32
    return %c0_i32, %c0_i32_0 : i32, i32
  }
  func.func @transform_7(%arg0: i32) -> (i32, i32, i32) {
    %c0_i32 = arith.constant 0 : i32
    %c0_i32_0 = arith.constant 0 : i32
    %c0_i32_1 = arith.constant 0 : i32
    return %arg0, %c0_i32, %c0_i32_0 : i32, i32, i32
  }
}

</mosaic_0001>

<llo_original>
// kernel: tpu_custom_call.1
$region0: #{tpu_custom_call.1}
  #allocation0 [shape = 'u32[]', space=smem, size = 0x4, offset = 0x4, fixed_abs, tag = 'smem constant byte address 0x4 - core index']
  #allocation1 [shape = 'u32[72,128]{1,0:T(1,128)}', space=vmem, size = 0x9000, scoped, tag = 'internal scratch']
  #allocation2 [shape = 'f32[18,48,128]{2,1,0:T(8,128)}', space=vmem, size = 0x6c000, scoped, tag = 'scratch operand']
  %s0 = inlined_call_operand.hbm [shape: f32[2,16,16,128], index: 0, kind: input, shape index: {}]
  %s1 = inlined_call_operand.hbm [shape: f32[9,128], index: 1, kind: input, shape index: {}]
  %s2 = inlined_call_operand.hbm [shape: f32[128,128], index: 2, kind: input, shape index: {}]
  %s3 = inlined_call_operand.vmem [shape: f32[1,128], index: 3, kind: input, shape index: {}]
  %s4 = inlined_call_operand.vmem [shape: f32[1,128], index: 4, kind: input, shape index: {}]
  %s5 = inlined_call_operand.hbm [shape: f32[128,128], index: 5, kind: input, shape index: {}]
  %s6 = inlined_call_operand.vmem [shape: f32[1,128], index: 6, kind: input, shape index: {}]
  %s7 = inlined_call_operand.hbm [shape: f32[2,1,128], index: 7, kind: output, shape index: {}]
  %s8 = sld [smem:[#allocation0]]
  $region77: #{tpu_custom_call.1} parent=0
    _
  %s10 = ssub.s32 1, %s8
  %s11 = scalar_select 0, %s10, %s8
  $region1: #{tpu_custom_call.1} parent=0
    #allocation3 [shape = 'u8[262144]{0}', space=vmem, size = 0x40000, scoped, tag = 'input window, operand 0']
    #allocation4 [shape = 's32[2]{0}', space=sflag, size = 0x8, scoped, tag = 'scoped memory for tpu_custom_call.1']
    #allocation5 [shape = 's32[2]{0}', space=sflag, size = 0x8, scoped, tag = 'scoped memory for tpu_custom_call.1']
    #allocation6 [shape = 'u8[8192]{0}', space=vmem, size = 0x2000, scoped, tag = 'input window, operand 1, single buffered']
    #allocation7 [shape = 's32[1]{0}', space=sflag, size = 0x4, scoped, tag = 'scoped memory for tpu_custom_call.1']
    #allocation8 [shape = 'u8[65536]{0}', space=vmem, size = 0x10000, scoped, tag = 'input window, operand 2, single buffered']
    #allocation9 [shape = 'u8[65536]{0}', space=vmem, size = 0x10000, scoped, tag = 'input window, operand 5, single buffered']
    #allocation10 [shape = 's32[1]{0}', space=sflag, size = 0x4, scoped, tag = 'scoped memory for tpu_custom_call.1']
    #allocation11 [shape = 'u8[1024]{0}', space=vmem, size = 0x400, scoped, tag = 'output window, operand 0']
    %12 = vsyncpa [#allocation4], 0
    %s13 = scalar_lea.sflag [#allocation4], 1
    %14 = vsyncpa %s13, 0
    %15 = vsyncpa [#allocation7], 0
    %16 = vsyncpa [#allocation10], 0
    %17 = vsyncpa [#allocation5], 0
    %s18 = scalar_lea.sflag [#allocation5], 1
    %19 = vsyncpa %s18, 0
    loop: start=0, step=1, limit=4
    $region2: #{tpu_custom_call.1} parent=1 // loop_pre_header
      _
    $region3: #{tpu_custom_call.1} parent=1 // loop_header
      %s21 = sphi 0, %s25
      %p22 = scmp.ge.s32.totalorder %s21, 4
      %s31 = sphi 0, %s33
      %s34 = sphi 0, %s31
      %s35 = sphi 0, %s34
      %s51 = sphi 0, %s35
      %s55 = sphi 0, %s55
      %s57 = sphi 0, %s55
      %s58 = sphi 0, %s57
      %s72 = sphi 0, %s58
      %s76 = sphi 0, %s76
      %s78 = sphi 0, %s76
      %s79 = sphi 0, %s78
      %s93 = sphi 0, %s79
      %s97 = sphi 0, %s97
      %s99 = sphi 0, %s97
      %s100 = sphi 0, %s99
      %s114 = sphi 0, %s100
      %s118 = sphi 0, %s118
      %s120 = sphi 0, %s118
      %s121 = sphi 0, %s120
      %s135 = sphi 0, %s121
      %s139 = sphi 0, %s139
      %s141 = sphi 0, %s139
      %s142 = sphi 0, %s141
      %s156 = sphi 0, %s142
      %s160 = sphi 0, %s160
      %s162 = sphi 0, %s160
      %s163 = sphi 0, %s162
      %s177 = sphi 0, %s163
      %s183 = sphi 0, %s185
      %s186 = sphi 0, %s183
      %s187 = sphi 0, %s186
      %s203 = sphi 0, %s187
    $region4: #{tpu_custom_call.1} parent=1 // loop_header_branch
      %24 = sbr.rel (%p22) target = $region8
    $region5: #{tpu_custom_call.1} parent=1 // loop_body
      %s26 = ssub.s32 %s21, 1
      %s27 = ssub.s32 %s21, 2
      %s28 = sadd.s32 %s21, 1
      %s29 = ssub.s32 %s21, %s28
      %p30 = scmp.eq.s32.totalorder %s29, 0
      %s32 = sadd.s32 %s31, 1
      %s33 = scalar_select %p30, %s31, %s32
      %p36 = pneg %p30
      %p37 = scmp.eq.s32.totalorder %s21, 1
      %p38 = por %p36, %p37
      %p39 = scmp.ne.s32.totalorder %s31, %s34
      %p40 = scmp.eq.s32.totalorder %s21, 0
      %p41 = por %p39, %p40
      %p42 = scmp.ne.s32.totalorder %s31, %s34
      %p43 = scmp.eq.s32.totalorder %s26, 1
      %p44 = por %p42, %p43
      %p45 = scmp.ne.s32.totalorder %s34, %s35
      %p46 = scmp.eq.s32.totalorder %s26, 0
      %p47 = por %p45, %p46
      %p48 = scmp.ne.s32.totalorder %s34, %s35
      %p49 = scmp.eq.s32.totalorder %s27, 1
      %p50 = por %p48, %p49
      %p52 = scmp.ne.s32.totalorder %s35, %s51
      %p53 = scmp.eq.s32.totalorder %s27, 0
      %p54 = por %p52, %p53
      %s56 = sadd.s32 %s55, 1
      %p59 = scmp.eq.s32.totalorder %s21, 1
      %p60 = scmp.ne.s32.totalorder %s55, %s57
      %p61 = scmp.eq.s32.totalorder %s21, 0
      %p62 = por %p60, %p61
      %p63 = scmp.ne.s32.totalorder %s55, %s57
      %p64 = scmp.eq.s32.totalorder %s26, 1
      %p65 = por %p63, %p64
      %p66 = scmp.ne.s32.totalorder %s57, %s58
      %p67 = scmp.eq.s32.totalorder %s26, 0
      %p68 = por %p66, %p67
      %p69 = scmp.ne.s32.totalorder %s57, %s58
      %p70 = scmp.eq.s32.totalorder %s27, 1
      %p71 = por %p69, %p70
      %p73 = scmp.ne.s32.totalorder %s58, %s72
      %p74 = scmp.eq.s32.totalorder %s27, 0
      %p75 = por %p73, %p74
      %s77 = sadd.s32 %s76, 1
      %p80 = scmp.eq.s32.totalorder %s21, 1
      %p81 = scmp.ne.s32.totalorder %s76, %s78
      %p82 = scmp.eq.s32.totalorder %s21, 0
      %p83 = por %p81, %p82
      %p84 = scmp.ne.s32.totalorder %s76, %s78
      %p85 = scmp.eq.s32.totalorder %s26, 1
      %p86 = por %p84, %p85
      %p87 = scmp.ne.s32.totalorder %s78, %s79
      %p88 = scmp.eq.s32.totalorder %s26, 0
      %p89 = por %p87, %p88
      %p90 = scmp.ne.s32.totalorder %s78, %s79
      %p91 = scmp.eq.s32.totalorder %s27, 1
      %p92 = por %p90, %p91
      %p94 = scmp.ne.s32.totalorder %s79, %s93
      %p95 = scmp.eq.s32.totalorder %s27, 0
      %p96 = por %p94, %p95
      %s98 = sadd.s32 %s97, 1
      %p101 = scmp.eq.s32.totalorder %s21, 1
      %p102 = scmp.ne.s32.totalorder %s97, %s99
      %p103 = scmp.eq.s32.totalorder %s21, 0
      %p104 = por %p102, %p103
      %p105 = scmp.ne.s32.totalorder %s97, %s99
      %p106 = scmp.eq.s32.totalorder %s26, 1
      %p107 = por %p105, %p106
      %p108 = scmp.ne.s32.totalorder %s99, %s100
      %p109 = scmp.eq.s32.totalorder %s26, 0
      %p110 = por %p108, %p109
      %p111 = scmp.ne.s32.totalorder %s99, %s100
      %p112 = scmp.eq.s32.totalorder %s27, 1
      %p113 = por %p111, %p112
      %p115 = scmp.ne.s32.totalorder %s100, %s114
      %p116 = scmp.eq.s32.totalorder %s27, 0
      %p117 = por %p115, %p116
      %s119 = sadd.s32 %s118, 1
      %p122 = scmp.eq.s32.totalorder %s21, 1
      %p123 = scmp.ne.s32.totalorder %s118, %s120
      %p124 = scmp.eq.s32.totalorder %s21, 0
      %p125 = por %p123, %p124
      %p126 = scmp.ne.s32.totalorder %s118, %s120
      %p127 = scmp.eq.s32.totalorder %s26, 1
      %p128 = por %p126, %p127
      %p129 = scmp.ne.s32.totalorder %s120, %s121
      %p130 = scmp.eq.s32.totalorder %s26, 0
      %p131 = por %p129, %p130
      %p132 = scmp.ne.s32.totalorder %s120, %s121
      %p133 = scmp.eq.s32.totalorder %s27, 1
      %p134 = por %p132, %p133
      %p136 = scmp.ne.s32.totalorder %s121, %s135
      %p137 = scmp.eq.s32.totalorder %s27, 0
      %p138 = por %p136, %p137
      %s140 = sadd.s32 %s139, 1
      %p143 = scmp.eq.s32.totalorder %s21, 1
      %p144 = scmp.ne.s32.totalorder %s139, %s141
      %p145 = scmp.eq.s32.totalorder %s21, 0
      %p146 = por %p144, %p145
      %p147 = scmp.ne.s32.totalorder %s139, %s141
      %p148 = scmp.eq.s32.totalorder %s26, 1
      %p149 = por %p147, %p148
      %p150 = scmp.ne.s32.totalorder %s141, %s142
      %p151 = scmp.eq.s32.totalorder %s26, 0
      %p152 = por %p150, %p151
      %p153 = scmp.ne.s32.totalorder %s141, %s142
      %p154 = scmp.eq.s32.totalorder %s27, 1
      %p155 = por %p153, %p154
      %p157 = scmp.ne.s32.totalorder %s142, %s156
      %p158 = scmp.eq.s32.totalorder %s27, 0
      %p159 = por %p157, %p158
      %s161 = sadd.s32 %s160, 1
      %p164 = scmp.eq.s32.totalorder %s21, 1
      %p165 = scmp.ne.s32.totalorder %s160, %s162
      %p166 = scmp.eq.s32.totalorder %s21, 0
      %p167 = por %p165, %p166
      %p168 = scmp.ne.s32.totalorder %s160, %s162
      %p169 = scmp.eq.s32.totalorder %s26, 1
      %p170 = por %p168, %p169
      %p171 = scmp.ne.s32.totalorder %s162, %s163
      %p172 = scmp.eq.s32.totalorder %s26, 0
      %p173 = por %p171, %p172
      %p174 = scmp.ne.s32.totalorder %s162, %s163
      %p175 = scmp.eq.s32.totalorder %s27, 1
      %p176 = por %p174, %p175
      %p178 = scmp.ne.s32.totalorder %s163, %s177
      %p179 = scmp.eq.s32.totalorder %s27, 0
      %p180 = por %p178, %p179
      %s181 = ssub.s32 %s21, %s28
      %p182 = scmp.eq.s32.totalorder %s181, 0
      %s184 = sadd.s32 %s183, 1
      %s185 = scalar_select %p182, %s183, %s184
      %p188 = pneg %p182
      %p189 = scmp.eq.s32.totalorder %s21, 1
      %p190 = por %p188, %p189
      %p191 = scmp.ne.s32.totalorder %s183, %s186
      %p192 = scmp.eq.s32.totalorder %s21, 0
      %p193 = por %p191, %p192
      %p194 = scmp.ne.s32.totalorder %s183, %s186
      %p195 = scmp.eq.s32.totalorder %s26, 1
      %p196 = por %p194, %p195
      %p197 = scmp.ne.s32.totalorder %s186, %s187
      %p198 = scmp.eq.s32.totalorder %s26, 0
      %p199 = por %p197, %p198
      %p200 = scmp.ne.s32.totalorder %s186, %s187
      %p201 = scmp.eq.s32.totalorder %s27, 1
      %p202 = por %p200, %p201
      %p204 = scmp.ne.s32.totalorder %s187, %s203
      %p205 = scmp.eq.s32.totalorder %s27, 0
      %p206 = por %p204, %p205
      %p207 = scmp.le.s32.totalorder 1, %s21
      %p208 = scmp.lt.s32.totalorder %s21, 3
      %p209 = pnand %p207, %p208
      %p210 = pneg %p209
      // Predicated region
      $region9: #{tpu_custom_call.1} parent=5 // pred_check
        _
      $region10: #{tpu_custom_call.1} parent=5 // pred_check_branch
        %212 = sbr.rel (%p209) target = $region12
      $region11: #{tpu_custom_call.1} parent=5 // pred_region
        %s213 = ssub.s32 %s21, 1
        // Predicated region
        $region13: #{tpu_custom_call.1} parent=11 // pred_check
          %p214 = pneg %p68
        $region14: #{tpu_custom_call.1} parent=11 // pred_check_branch
          %216 = sbr.rel (%p214) target = $region16
        $region15: #{tpu_custom_call.1} parent=11 // pred_region
          %218 = vsyncadd [#allocation7], 0
          %s219 = sshll.u32 %s1, 4
          %s220 = int_to_ptr.hbm [resolvable:$true] %s219
          %s221 = sshll.u32 [#allocation6], 4
          %s222 = int_to_ptr.vmem [resolvable:$true] %s221
          %227 = dma.hbm_to_vmem [thread:$0]  %s220, 256, %s222, [#allocation7], 128, 128, 8
        $region16: #{tpu_custom_call.1} parent=11 // pred_fallthru
          _
        // Predicated region
        $region17: #{tpu_custom_call.1} parent=11 // pred_check
          %p228 = pneg %p89
        $region18: #{tpu_custom_call.1} parent=11 // pred_check_branch
          %230 = sbr.rel (%p228) target = $region20
        $region19: #{tpu_custom_call.1} parent=11 // pred_region
          %232 = vsyncadd [#allocation7], 0
          %s233 = sshll.u32 %s2, 4
          %s234 = int_to_ptr.hbm [resolvable:$true] %s233
          %s235 = sshll.u32 [#allocation8], 4
          %s236 = int_to_ptr.vmem [resolvable:$true] %s235
          %241 = dma.hbm_to_vmem [thread:$0]  %s234, 2048, %s236, [#allocation7], 128, 128, 8
        $region20: #{tpu_custom_call.1} parent=11 // pred_fallthru
          _
        // Predicated region
        $region21: #{tpu_custom_call.1} parent=11 // pred_check
          %p242 = pneg %p110
        $region22: #{tpu_custom_call.1} parent=11 // pred_check_branch
          %244 = sbr.rel (%p242) target = $region24
        $region23: #{tpu_custom_call.1} parent=11 // pred_region
          _
        $region24: #{tpu_custom_call.1} parent=11 // pred_fallthru
          _
        // Predicated region
        $region25: #{tpu_custom_call.1} parent=11 // pred_check
          %p245 = pneg %p131
        $region26: #{tpu_custom_call.1} parent=11 // pred_check_branch
          %247 = sbr.rel (%p245) target = $region28
        $region27: #{tpu_custom_call.1} parent=11 // pred_region
          _
        $region28: #{tpu_custom_call.1} parent=11 // pred_fallthru
          _
        // Predicated region
        $region29: #{tpu_custom_call.1} parent=11 // pred_check
          %p248 = pneg %p152
        $region30: #{tpu_custom_call.1} parent=11 // pred_check_branch
          %250 = sbr.rel (%p248) target = $region32
        $region31: #{tpu_custom_call.1} parent=11 // pred_region
          %252 = vsyncadd [#allocation10], 0
          %s253 = sshll.u32 %s5, 4
          %s254 = int_to_ptr.hbm [resolvable:$true] %s253
          %s255 = sshll.u32 [#allocation9], 4
          %s256 = int_to_ptr.vmem [resolvable:$true] %s255
          %261 = dma.hbm_to_vmem [thread:$0]  %s254, 2048, %s256, [#allocation10], 128, 128, 8
        $region32: #{tpu_custom_call.1} parent=11 // pred_fallthru
          _
        // Predicated region
        $region33: #{tpu_custom_call.1} parent=11 // pred_check
          %p262 = pneg %p173
        $region34: #{tpu_custom_call.1} parent=11 // pred_check_branch
          %264 = sbr.rel (%p262) target = $region36
        $region35: #{tpu_custom_call.1} parent=11 // pred_region
          _
        $region36: #{tpu_custom_call.1} parent=11 // pred_fallthru
          _
      $region12: #{tpu_custom_call.1} parent=5 // pred_fallthru
        _
      %p265 = scmp.lt.s32.totalorder %s21, 2
      // Predicated region
      $region37: #{tpu_custom_call.1} parent=5 // pred_check
        %p266 = pneg %p265
      $region38: #{tpu_custom_call.1} parent=5 // pred_check_branch
        %268 = sbr.rel (%p266) target = $region40
      $region39: #{tpu_custom_call.1} parent=5 // pred_region
        // Predicated region
        $region41: #{tpu_custom_call.1} parent=39 // pred_check
          %p269 = pneg %p41
        $region42: #{tpu_custom_call.1} parent=39 // pred_check_branch
          %271 = sbr.rel (%p269) target = $region44
        $region43: #{tpu_custom_call.1} parent=39 // pred_region
          %s272 = sand.u32 %s31, 1
          %s273 = scalar_lea.sflag [#allocation4], %s272
          %s274 = sand.u32 %s31, 1
          %s275 = smul.addr %s274, 256
          %s276 = scalar_lea.vmem [#allocation3], %s275
          %278 = vsyncadd %s273, 0
          %s279 = smul.addr %s21, 32
          %s280 = smul.addr %s279, 8
          %s281 = scalar_lea.hbm %s0, %s280
          %s282 = sshll.u32 %s281, 4
          %s283 = int_to_ptr.hbm [resolvable:$true] %s282
          %s284 = sshll.u32 %s276, 4
          %s285 = int_to_ptr.vmem [resolvable:$true] %s284
          %290 = dma.hbm_to_vmem [thread:$0]  %s283, 4096, %s285, %s273, 128, 128, 8
        $region44: #{tpu_custom_call.1} parent=39 // pred_fallthru
          _
      $region40: #{tpu_custom_call.1} parent=5 // pred_fallthru
        _
      %p291 = scmp.le.s32.totalorder 1, %s21
      %p292 = scmp.lt.s32.totalorder %s21, 3
      %p293 = pnand %p291, %p292
      %p294 = pneg %p293
      // Predicated region
      $region45: #{tpu_custom_call.1} parent=5 // pred_check
        _
      $region46: #{tpu_custom_call.1} parent=5 // pred_check_branch
        %296 = sbr.rel (%p293) target = $region48
      $region47: #{tpu_custom_call.1} parent=5 // pred_region
        %s297 = ssub.s32 %s21, 1
        %s298 = sand.u32 %s34, 1
        %s299 = scalar_lea.sflag [#allocation4], %s298
        %s300 = sand.u32 %s34, 1
        %s301 = smul.addr %s300, 256
        %s302 = scalar_lea.vmem [#allocation3], %s301
        // Predicated region
        $region49: #{tpu_custom_call.1} parent=47 // pred_check
          %p303 = pneg %p47
        $region50: #{tpu_custom_call.1} parent=47 // pred_check_branch
          %305 = sbr.rel (%p303) target = $region52
        $region51: #{tpu_custom_call.1} parent=47 // pred_region
          %307 = dma.done %s299, 4096
        $region52: #{tpu_custom_call.1} parent=47 // pred_fallthru
          _
        // Predicated region
        $region53: #{tpu_custom_call.1} parent=47 // pred_check
          %p308 = pneg %p68
        $region54: #{tpu_custom_call.1} parent=47 // pred_check_branch
          %310 = sbr.rel (%p308) target = $region56
        $region55: #{tpu_custom_call.1} parent=47 // pred_region
          %312 = dma.done [#allocation7], 256
        $region56: #{tpu_custom_call.1} parent=47 // pred_fallthru
          _
        // Predicated region
        $region57: #{tpu_custom_call.1} parent=47 // pred_check
          %p313 = pneg %p89
        $region58: #{tpu_custom_call.1} parent=47 // pred_check_branch
          %315 = sbr.rel (%p313) target = $region60
        $region59: #{tpu_custom_call.1} parent=47 // pred_region
          %317 = dma.done [#allocation7], 2048
        $region60: #{tpu_custom_call.1} parent=47 // pred_fallthru
          _
        // Predicated region
        $region61: #{tpu_custom_call.1} parent=47 // pred_check
          %p318 = pneg %p152
        $region62: #{tpu_custom_call.1} parent=47 // pred_check_branch
          %320 = sbr.rel (%p318) target = $region64
        $region63: #{tpu_custom_call.1} parent=47 // pred_region
          %322 = dma.done [#allocation10], 2048
        $region64: #{tpu_custom_call.1} parent=47 // pred_fallthru
          _
        %s323 = sand.u32 %s34, 1
        %s324 = scalar_lea.sflag [#allocation4], %s323
        %s325 = sand.u32 %s34, 1
        %s326 = smul.addr %s325, 256
        %s327 = scalar_lea.vmem [#allocation3], %s326
        %p328 = pneg %p47
        %p329 = pneg %p44
        %p330 = pneg %p68
        %p331 = pneg %p65
        %p332 = pneg %p89
        %p333 = pneg %p86
        %p334 = pneg %p110
        %p335 = pneg %p107
        %p336 = pneg %p131
        %p337 = pneg %p128
        %p338 = pneg %p152
        %p339 = pneg %p149
        %p340 = pneg %p173
        %p341 = pneg %p170
        %p342 = pneg %p199
        %p343 = pneg %p196
        %s344 = sand.u32 %s186, 1
        %s345 = scalar_lea.sflag [#allocation5], %s344
        %s346 = sand.u32 %s186, 1
        %s347 = scalar_lea.vmem [#allocation11], %s346
        %v348 = vld [vmem:[#allocation6] sm:$0xff]
        %v349 = vld [vmem:[#allocation6 + $0x8] sm:$0x1]
        %v350 = vld [vmem:[#allocation8] sm:$0xff]
        %v351 = vld [vmem:[#allocation8 + $0x8] sm:$0xff]
        %v352 = vld [vmem:[#allocation8 + $0x10] sm:$0xff]
        %v353 = vld [vmem:[#allocation8 + $0x18] sm:$0xff]
        %v354 = vld [vmem:[#allocation8 + $0x20] sm:$0xff]
        %v355 = vld [vmem:[#allocation8 + $0x28] sm:$0xff]
        %v356 = vld [vmem:[#allocation8 + $0x30] sm:$0xff]
        %v357 = vld [vmem:[#allocation8 + $0x38] sm:$0xff]
        %v358 = vld [vmem:[#allocation8 + $0x40] sm:$0xff]
        %v359 = vld [vmem:[#allocation8 + $0x48] sm:$0xff]
        %v360 = vld [vmem:[#allocation8 + $0x50] sm:$0xff]
        %v361 = vld [vmem:[#allocation8 + $0x58] sm:$0xff]
        %v362 = vld [vmem:[#allocation8 + $0x60] sm:$0xff]
        %v363 = vld [vmem:[#allocation8 + $0x68] sm:$0xff]
        %v364 = vld [vmem:[#allocation8 + $0x70] sm:$0xff]
        %v365 = vld [vmem:[#allocation8 + $0x78] sm:$0xff]
        %v366 = vld [vmem:[%s3] sm:$0x1]
        %v367 = vld [vmem:[%s4] sm:$0x1]
        %368 = vst [vmem:[#allocation2] sm:$0xff] 0.0
        %369 = vst [vmem:[#allocation2 + $0x8] sm:$0xff] 0.0
        %370 = vst [vmem:[#allocation2 + $0x10] sm:$0xff] 0.0
        %371 = vst [vmem:[#allocation2 + $0x18] sm:$0xff] 0.0
        %372 = vst [vmem:[#allocation2 + $0x20] sm:$0xff] 0.0
        %373 = vst [vmem:[#allocation2 + $0x28] sm:$0xff] 0.0
        %s374 = scalar_lea.vmem [#allocation2], 816
        %375 = vst [vmem:[%s374] sm:$0xff] 0.0
        %376 = vst [vmem:[%s374 + $0x8] sm:$0xff] 0.0
        %377 = vst [vmem:[%s374 + $0x10] sm:$0xff] 0.0
        %378 = vst [vmem:[%s374 + $0x18] sm:$0xff] 0.0
        %379 = vst [vmem:[%s374 + $0x20] sm:$0xff] 0.0
        %380 = vst [vmem:[%s374 + $0x28] sm:$0xff] 0.0
        %381 = vst [vmem:[#allocation2 + $0x8] sm:$0xff] 0.0
        %382 = vst [vmem:[#allocation2 + $0x38] sm:$0xff] 0.0
        %383 = vst [vmem:[#allocation2 + $0x68] sm:$0xff] 0.0
        %384 = vst [vmem:[#allocation2 + $0x98] sm:$0xff] 0.0
        %385 = vst [vmem:[#allocation2 + $0xc8] sm:$0xff] 0.0
        %386 = vst [vmem:[#allocation2 + $0xf8] sm:$0xff] 0.0
        %387 = vst [vmem:[#allocation2 + $0x128] sm:$0xff] 0.0
        %388 = vst [vmem:[#allocation2 + $0x158] sm:$0xff] 0.0
        %389 = vst [vmem:[#allocation2 + $0x188] sm:$0xff] 0.0
        %390 = vst [vmem:[#allocation2 + $0x1b8] sm:$0xff] 0.0
        %391 = vst [vmem:[#allocation2 + $0x1e8] sm:$0xff] 0.0
        %392 = vst [vmem:[#allocation2 + $0x218] sm:$0xff] 0.0
        %393 = vst [vmem:[#allocation2 + $0x248] sm:$0xff] 0.0
        %394 = vst [vmem:[#allocation2 + $0x278] sm:$0xff] 0.0
        %395 = vst [vmem:[#allocation2 + $0x2a8] sm:$0xff] 0.0
        %396 = vst [vmem:[#allocation2 + $0x2d8] sm:$0xff] 0.0
        %397 = vst [vmem:[#allocation2 + $0x308] sm:$0xff] 0.0
        %398 = vst [vmem:[#allocation2 + $0x338] sm:$0xff] 0.0
        %399 = vst [vmem:[#allocation2 + $0x20] sm:$0xff] 0.0
        %400 = vst [vmem:[#allocation2 + $0x50] sm:$0xff] 0.0
        %401 = vst [vmem:[#allocation2 + $0x80] sm:$0xff] 0.0
        %402 = vst [vmem:[#allocation2 + $0xb0] sm:$0xff] 0.0
        %403 = vst [vmem:[#allocation2 + $0xe0] sm:$0xff] 0.0
        %404 = vst [vmem:[#allocation2 + $0x110] sm:$0xff] 0.0
        %405 = vst [vmem:[#allocation2 + $0x140] sm:$0xff] 0.0
        %406 = vst [vmem:[#allocation2 + $0x170] sm:$0xff] 0.0
        %407 = vst [vmem:[#allocation2 + $0x1a0] sm:$0xff] 0.0
        %408 = vst [vmem:[#allocation2 + $0x1d0] sm:$0xff] 0.0
        %409 = vst [vmem:[#allocation2 + $0x200] sm:$0xff] 0.0
        %410 = vst [vmem:[#allocation2 + $0x230] sm:$0xff] 0.0
        %411 = vst [vmem:[#allocation2 + $0x260] sm:$0xff] 0.0
        %412 = vst [vmem:[#allocation2 + $0x290] sm:$0xff] 0.0
        %413 = vst [vmem:[#allocation2 + $0x2c0] sm:$0xff] 0.0
        %414 = vst [vmem:[#allocation2 + $0x2f0] sm:$0xff] 0.0
        %415 = vst [vmem:[#allocation2 + $0x320] sm:$0xff] 0.0
        %416 = vst [vmem:[#allocation2 + $0x350] sm:$0xff] 0.0
        %v417 = vld [vmem:[%s302] sm:$0xff]
        %v418 = vld [vmem:[%s302 + $0x8] sm:$0xff]
        %v419 = vld [vmem:[%s302 + $0x10] sm:$0xff]
        %v420 = vld [vmem:[%s302 + $0x18] sm:$0xff]
        %v421 = vld [vmem:[%s302 + $0x20] sm:$0xff]
        %v422 = vld [vmem:[%s302 + $0x28] sm:$0xff]
        %v423 = vld [vmem:[%s302 + $0x30] sm:$0xff]
        %v424 = vld [vmem:[%s302 + $0x38] sm:$0xff]
        %v425 = vld [vmem:[%s302 + $0x40] sm:$0xff]
        %v426 = vld [vmem:[%s302 + $0x48] sm:$0xff]
        %v427 = vld [vmem:[%s302 + $0x50] sm:$0xff]
        %v428 = vld [vmem:[%s302 + $0x58] sm:$0xff]
        %v429 = vld [vmem:[%s302 + $0x60] sm:$0xff]
        %v430 = vld [vmem:[%s302 + $0x68] sm:$0xff]
        %v431 = vld [vmem:[%s302 + $0x70] sm:$0xff]
        %v432 = vld [vmem:[%s302 + $0x78] sm:$0xff]
        %v433 = vld [vmem:[%s302 + $0x80] sm:$0xff]
        %v434 = vld [vmem:[%s302 + $0x88] sm:$0xff]
        %v435 = vld [vmem:[%s302 + $0x90] sm:$0xff]
        %v436 = vld [vmem:[%s302 + $0x98] sm:$0xff]
        %v437 = vld [vmem:[%s302 + $0xa0] sm:$0xff]
        %v438 = vld [vmem:[%s302 + $0xa8] sm:$0xff]
        %v439 = vld [vmem:[%s302 + $0xb0] sm:$0xff]
        %v440 = vld [vmem:[%s302 + $0xb8] sm:$0xff]
        %v441 = vld [vmem:[%s302 + $0xc0] sm:$0xff]
        %v442 = vld [vmem:[%s302 + $0xc8] sm:$0xff]
        %v443 = vld [vmem:[%s302 + $0xd0] sm:$0xff]
        %v444 = vld [vmem:[%s302 + $0xd8] sm:$0xff]
        %v445 = vld [vmem:[%s302 + $0xe0] sm:$0xff]
        %v446 = vld [vmem:[%s302 + $0xe8] sm:$0xff]
        %v447 = vld [vmem:[%s302 + $0xf0] sm:$0xff]
        %v448 = vld [vmem:[%s302 + $0xf8] sm:$0xff]
        %s449 = scalar_lea.vmem [#allocation2], 48
        %450 = vst [vmem:[%s449 + $0x10] sm:$0xff] %v417
        %451 = vst [vmem:[%s449 + $0x18] sm:$0xff] %v418
        %452 = vst [vmem:[%s449 + $0x40] sm:$0xff] %v419
        %453 = vst [vmem:[%s449 + $0x48] sm:$0xff] %v420
        %454 = vst [vmem:[%s449 + $0x70] sm:$0xff] %v421
        %455 = vst [vmem:[%s449 + $0x78] sm:$0xff] %v422
        %456 = vst [vmem:[%s449 + $0xa0] sm:$0xff] %v423
        %457 = vst [vmem:[%s449 + $0xa8] sm:$0xff] %v424
        %458 = vst [vmem:[%s449 + $0xd0] sm:$0xff] %v425
        %459 = vst [vmem:[%s449 + $0xd8] sm:$0xff] %v426
        %460 = vst [vmem:[%s449 + $0x100] sm:$0xff] %v427
        %461 = vst [vmem:[%s449 + $0x108] sm:$0xff] %v428
        %462 = vst [vmem:[%s449 + $0x130] sm:$0xff] %v429
        %463 = vst [vmem:[%s449 + $0x138] sm:$0xff] %v430
        %464 = vst [vmem:[%s449 + $0x160] sm:$0xff] %v431
        %465 = vst [vmem:[%s449 + $0x168] sm:$0xff] %v432
        %466 = vst [vmem:[%s449 + $0x190] sm:$0xff] %v433
        %467 = vst [vmem:[%s449 + $0x198] sm:$0xff] %v434
        %468 = vst [vmem:[%s449 + $0x1c0] sm:$0xff] %v435
        %469 = vst [vmem:[%s449 + $0x1c8] sm:$0xff] %v436
        %470 = vst [vmem:[%s449 + $0x1f0] sm:$0xff] %v437
        %471 = vst [vmem:[%s449 + $0x1f8] sm:$0xff] %v438
        %472 = vst [vmem:[%s449 + $0x220] sm:$0xff] %v439
        %473 = vst [vmem:[%s449 + $0x228] sm:$0xff] %v440
        %474 = vst [vmem:[%s449 + $0x250] sm:$0xff] %v441
        %475 = vst [vmem:[%s449 + $0x258] sm:$0xff] %v442
        %476 = vst [vmem:[%s449 + $0x280] sm:$0xff] %v443
        %477 = vst [vmem:[%s449 + $0x288] sm:$0xff] %v444
        %478 = vst [vmem:[%s449 + $0x2b0] sm:$0xff] %v445
        %479 = vst [vmem:[%s449 + $0x2b8] sm:$0xff] %v446
        %480 = vst [vmem:[%s449 + $0x2e0] sm:$0xff] %v447
        %481 = vst [vmem:[%s449 + $0x2e8] sm:$0xff] %v448
        %v482 = vld [vmem:[#allocation2 + $0xf] sm:$0xff]
        %v483 = vld [vmem:[#allocation2 + $0x17] sm:$0xff]
        %v484 = vld [vmem:[#allocation2 + $0x3f] sm:$0xff]
        %v485 = vld [vmem:[#allocation2 + $0x47] sm:$0xff]
        %v486 = vld [vmem:[#allocation2 + $0x6f] sm:$0xff]
        %v487 = vld [vmem:[#allocation2 + $0x77] sm:$0xff]
        %v488 = vld [vmem:[#allocation2 + $0x9f] sm:$0xff]
        %v489 = vld [vmem:[#allocation2 + $0xa7] sm:$0xff]
        %v490 = vld [vmem:[#allocation2 + $0xcf] sm:$0xff]
        %v491 = vld [vmem:[#allocation2 + $0xd7] sm:$0xff]
        %v492 = vld [vmem:[#allocation2 + $0xff] sm:$0xff]
        %v493 = vld [vmem:[#allocation2 + $0x107] sm:$0xff]
        %v494 = vperm.slane %v348, 0
        %v495 = vmul.f32 %v482, %v494
        %v496 = vmul.f32 %v483, %v494
        %v497 = vmul.f32 %v484, %v494
        %v498 = vmul.f32 %v485, %v494
        %v499 = vmul.f32 %v486, %v494
        %v500 = vmul.f32 %v487, %v494
        %v501 = vmul.f32 %v488, %v494
        %v502 = vmul.f32 %v489, %v494
        %v503 = vperm.slane %v348, 3
        %v504 = vmul.f32 %v484, %v503
        %v505 = vmul.f32 %v485, %v503
        %v506 = vmul.f32 %v486, %v503
        %v507 = vmul.f32 %v487, %v503
        %v508 = vmul.f32 %v488, %v503
        %v509 = vmul.f32 %v489, %v503
        %v510 = vmul.f32 %v490, %v503
        %v511 = vmul.f32 %v491, %v503
        %v512 = vadd.f32 %v495, %v504
        %v513 = vadd.f32 %v496, %v505
        %v514 = vadd.f32 %v497, %v506
        %v515 = vadd.f32 %v498, %v507
        %v516 = vadd.f32 %v499, %v508
        %v517 = vadd.f32 %v500, %v509
        %v518 = vadd.f32 %v501, %v510
        %v519 = vadd.f32 %v502, %v511
        %v520 = vperm.slane %v348, 6
        %v521 = vmul.f32 %v486, %v520
        %v522 = vmul.f32 %v487, %v520
        %v523 = vmul.f32 %v488, %v520
        %v524 = vmul.f32 %v489, %v520
        %v525 = vmul.f32 %v490, %v520
        %v526 = vmul.f32 %v491, %v520
        %v527 = vmul.f32 %v492, %v520
        %v528 = vmul.f32 %v493, %v520
        %v529 = vadd.f32 %v512, %v521
        %v530 = vadd.f32 %v513, %v522
        %v531 = vadd.f32 %v514, %v523
        %v532 = vadd.f32 %v515, %v524
        %v533 = vadd.f32 %v516, %v525
        %v534 = vadd.f32 %v517, %v526
        %v535 = vadd.f32 %v518, %v527
        %v536 = vadd.f32 %v519, %v528
        %v537 = vld [vmem:[#allocation2 + $0x10] sm:$0xff]
        %v538 = vld [vmem:[#allocation2 + $0x18] sm:$0xff]
        %v539 = vld [vmem:[#allocation2 + $0x40] sm:$0xff]
        %v540 = vld [vmem:[#allocation2 + $0x48] sm:$0xff]
        %v541 = vld [vmem:[#allocation2 + $0x70] sm:$0xff]
        %v542 = vld [vmem:[#allocation2 + $0x78] sm:$0xff]
        %v543 = vld [vmem:[#allocation2 + $0xa0] sm:$0xff]
        %v544 = vld [vmem:[#allocation2 + $0xa8] sm:$0xff]
        %v545 = vld [vmem:[#allocation2 + $0xd0] sm:$0xff]
        %v546 = vld [vmem:[#allocation2 + $0xd8] sm:$0xff]
        %v547 = vld [vmem:[#allocation2 + $0x100] sm:$0xff]
        %v548 = vld [vmem:[#allocation2 + $0x108] sm:$0xff]
        %v549 = vperm.slane %v348, 1
        %v550 = vmul.f32 %v537, %v549
        %v551 = vmul.f32 %v538, %v549
        %v552 = vmul.f32 %v539, %v549
        %v553 = vmul.f32 %v540, %v549
        %v554 = vmul.f32 %v541, %v549
        %v555 = vmul.f32 %v542, %v549
        %v556 = vmul.f32 %v543, %v549
        %v557 = vmul.f32 %v544, %v549
        %v558 = vadd.f32 %v529, %v550
        %v559 = vadd.f32 %v530, %v551
        %v560 = vadd.f32 %v531, %v552
        %v561 = vadd.f32 %v532, %v553
        %v562 = vadd.f32 %v533, %v554
        %v563 = vadd.f32 %v534, %v555
        %v564 = vadd.f32 %v535, %v556
        %v565 = vadd.f32 %v536, %v557
        %v566 = vperm.slane %v348, 4
        %v567 = vmul.f32 %v539, %v566
        %v568 = vmul.f32 %v540, %v566
        %v569 = vmul.f32 %v541, %v566
        %v570 = vmul.f32 %v542, %v566
        %v571 = vmul.f32 %v543, %v566
        %v572 = vmul.f32 %v544, %v566
        %v573 = vmul.f32 %v545, %v566
        %v574 = vmul.f32 %v546, %v566
        %v575 = vadd.f32 %v558, %v567
        %v576 = vadd.f32 %v559, %v568
        %v577 = vadd.f32 %v560, %v569
        %v578 = vadd.f32 %v561, %v570
        %v579 = vadd.f32 %v562, %v571
        %v580 = vadd.f32 %v563, %v572
        %v581 = vadd.f32 %v564, %v573
        %v582 = vadd.f32 %v565, %v574
        %v583 = vperm.slane %v348, 7
        %v584 = vmul.f32 %v541, %v583
        %v585 = vmul.f32 %v542, %v583
        %v586 = vmul.f32 %v543, %v583
        %v587 = vmul.f32 %v544, %v583
        %v588 = vmul.f32 %v545, %v583
        %v589 = vmul.f32 %v546, %v583
        %v590 = vmul.f32 %v547, %v583
        %v591 = vmul.f32 %v548, %v583
        %v592 = vadd.f32 %v575, %v584
        %v593 = vadd.f32 %v576, %v585
        %v594 = vadd.f32 %v577, %v586
        %v595 = vadd.f32 %v578, %v587
        %v596 = vadd.f32 %v579, %v588
        %v597 = vadd.f32 %v580, %v589
        %v598 = vadd.f32 %v581, %v590
        %v599 = vadd.f32 %v582, %v591
        %v600 = vld [vmem:[#allocation2 + $0x11] sm:$0xff]
        %v601 = vld [vmem:[#allocation2 + $0x19] sm:$0xff]
        %v602 = vld [vmem:[#allocation2 + $0x41] sm:$0xff]
        %v603 = vld [vmem:[#allocation2 + $0x49] sm:$0xff]
        %v604 = vld [vmem:[#allocation2 + $0x71] sm:$0xff]
        %v605 = vld [vmem:[#allocation2 + $0x79] sm:$0xff]
        %v606 = vld [vmem:[#allocation2 + $0xa1] sm:$0xff]
        %v607 = vld [vmem:[#allocation2 + $0xa9] sm:$0xff]
        %v608 = vld [vmem:[#allocation2 + $0xd1] sm:$0xff]
        %v609 = vld [vmem:[#allocation2 + $0xd9] sm:$0xff]
        %v610 = vld [vmem:[#allocation2 + $0x101] sm:$0xff]
        %v611 = vld [vmem:[#allocation2 + $0x109] sm:$0xff]
        %v612 = vperm.slane %v348, 2
        %v613 = vmul.f32 %v600, %v612
        %v614 = vmul.f32 %v601, %v612
        %v615 = vmul.f32 %v602, %v612
        %v616 = vmul.f32 %v603, %v612
        %v617 = vmul.f32 %v604, %v612
        %v618 = vmul.f32 %v605, %v612
        %v619 = vmul.f32 %v606, %v612
        %v620 = vmul.f32 %v607, %v612
        %v621 = vadd.f32 %v592, %v613
        %v622 = vadd.f32 %v593, %v614
        %v623 = vadd.f32 %v594, %v615
        %v624 = vadd.f32 %v595, %v616
        %v625 = vadd.f32 %v596, %v617
        %v626 = vadd.f32 %v597, %v618
        %v627 = vadd.f32 %v598, %v619
        %v628 = vadd.f32 %v599, %v620
        %v629 = vperm.slane %v348, 5
        %v630 = vmul.f32 %v602, %v629
        %v631 = vmul.f32 %v603, %v629
        %v632 = vmul.f32 %v604, %v629
        %v633 = vmul.f32 %v605, %v629
        %v634 = vmul.f32 %v606, %v629
        %v635 = vmul.f32 %v607, %v629
        %v636 = vmul.f32 %v608, %v629
        %v637 = vmul.f32 %v609, %v629
        %v638 = vadd.f32 %v621, %v630
        %v639 = vadd.f32 %v622, %v631
        %v640 = vadd.f32 %v623, %v632
        %v641 = vadd.f32 %v624, %v633
        %v642 = vadd.f32 %v625, %v634
        %v643 = vadd.f32 %v626, %v635
        %v644 = vadd.f32 %v627, %v636
        %v645 = vadd.f32 %v628, %v637
        %v646 = vperm.slane %v349, 0
        %v647 = vmul.f32 %v604, %v646
        %v648 = vmul.f32 %v605, %v646
        %v649 = vmul.f32 %v606, %v646
        %v650 = vmul.f32 %v607, %v646
        %v651 = vmul.f32 %v608, %v646
        %v652 = vmul.f32 %v609, %v646
        %v653 = vmul.f32 %v610, %v646
        %v654 = vmul.f32 %v611, %v646
        %v655 = vadd.f32 %v638, %v647
        %v656 = vadd.f32 %v639, %v648
        %v657 = vadd.f32 %v640, %v649
        %v658 = vadd.f32 %v641, %v650
        %v659 = vadd.f32 %v642, %v651
        %v660 = vadd.f32 %v643, %v652
        %v661 = vadd.f32 %v644, %v653
        %v662 = vadd.f32 %v645, %v654
        %663 = vmatpush.msra.mxu0 %v365
        %664 = vmatpush.msra.mxu0 %v364
        %665 = vmatpush.msra.mxu0 %v363
        %666 = vmatpush.msra.mxu0 %v362
        %667 = vmatpush.msra.mxu0 %v361
        %668 = vmatpush.msra.mxu0 %v360
        %669 = vmatpush.msra.mxu0 %v359
        %670 = vmatpush.msra.mxu0 %v358
        %671 = vmatpush.msra.mxu0 %v357
        %672 = vmatpush.msra.mxu0 %v356
        %673 = vmatpush.msra.mxu0 %v355
        %674 = vmatpush.msra.mxu0 %v354
        %675 = vmatpush.msra.mxu0 %v353
        %676 = vmatpush.msra.mxu0 %v352
        %677 = vmatpush.msra.mxu0 %v351
        %678 = vmatpush.msra.mxu0 %v350
        %679 = vmatmul.f32.gmra.mxu0 %v655
        %v680 = vpop.f32.mrf.mxu0
        %v681 = vadd.f32 0.0, %v680
        %682 = vmatmul.f32.gmra.mxu0 %v656
        %v683 = vpop.f32.mrf.mxu0
        %v684 = vadd.f32 0.0, %v683
        %685 = vmatmul.f32.gmra.mxu0 %v657
        %v686 = vpop.f32.mrf.mxu0
        %v687 = vadd.f32 0.0, %v686
        %688 = vmatmul.f32.gmra.mxu0 %v658
        %v689 = vpop.f32.mrf.mxu0
        %v690 = vadd.f32 0.0, %v689
        %691 = vmatmul.f32.gmra.mxu0 %v659
        %v692 = vpop.f32.mrf.mxu0
        %v693 = vadd.f32 0.0, %v692
        %694 = vmatmul.f32.gmra.mxu0 %v660
        %v695 = vpop.f32.mrf.mxu0
        %v696 = vadd.f32 0.0, %v695
        %697 = vmatmul.f32.gmra.mxu0 %v661
        %v698 = vpop.f32.mrf.mxu0
        %v699 = vadd.f32 0.0, %v698
        %700 = vmatmul.f32.gmra.mxu0 %v662
        %v701 = vpop.f32.mrf.mxu0
        %v702 = vadd.f32 0.0, %v701
        %703 = vdwg.mxu0
        %v704 = vsub.f32 %v655, %v681
        %v705 = vsub.f32 %v656, %v684
        %v706 = vsub.f32 %v657, %v687
        %v707 = vsub.f32 %v658, %v690
        %v708 = vsub.f32 %v659, %v693
        %v709 = vsub.f32 %v660, %v696
        %v710 = vsub.f32 %v661, %v699
        %v711 = vsub.f32 %v662, %v702
        %v712 = vmul.f32 %v704, %v704
        %v713 = vmul.f32 %v705, %v705
        %v714 = vmul.f32 %v706, %v706
        %v715 = vmul.f32 %v707, %v707
        %v716 = vmul.f32 %v708, %v708
        %v717 = vmul.f32 %v709, %v709
        %v718 = vmul.f32 %v710, %v710
        %v719 = vmul.f32 %v711, %v711
        %720 = vmatpush.msra.mxu0 %v365
        %721 = vmatpush.msra.mxu0 %v364
        %722 = vmatpush.msra.mxu0 %v363
        %723 = vmatpush.msra.mxu0 %v362
        %724 = vmatpush.msra.mxu0 %v361
        %725 = vmatpush.msra.mxu0 %v360
        %726 = vmatpush.msra.mxu0 %v359
        %727 = vmatpush.msra.mxu0 %v358
        %728 = vmatpush.msra.mxu0 %v357
        %729 = vmatpush.msra.mxu0 %v356
        %730 = vmatpush.msra.mxu0 %v355
        %731 = vmatpush.msra.mxu0 %v354
        %732 = vmatpush.msra.mxu0 %v353
        %733 = vmatpush.msra.mxu0 %v352
        %734 = vmatpush.msra.mxu0 %v351
        %735 = vmatpush.msra.mxu0 %v350
        %736 = vmatmul.f32.gmra.mxu0 %v712
        %v737 = vpop.f32.mrf.mxu0
        %v738 = vadd.f32 1e-05, %v737
        %739 = vmatmul.f32.gmra.mxu0 %v713
        %v740 = vpop.f32.mrf.mxu0
        %v741 = vadd.f32 1e-05, %v740
        %742 = vmatmul.f32.gmra.mxu0 %v714
        %v743 = vpop.f32.mrf.mxu0
        %v744 = vadd.f32 1e-05, %v743
        %745 = vmatmul.f32.gmra.mxu0 %v715
        %v746 = vpop.f32.mrf.mxu0
        %v747 = vadd.f32 1e-05, %v746
        %748 = vmatmul.f32.gmra.mxu0 %v716
        %v749 = vpop.f32.mrf.mxu0
        %v750 = vadd.f32 1e-05, %v749
        %751 = vmatmul.f32.gmra.mxu0 %v717
        %v752 = vpop.f32.mrf.mxu0
        %v753 = vadd.f32 1e-05, %v752
        %754 = vmatmul.f32.gmra.mxu0 %v718
        %v755 = vpop.f32.mrf.mxu0
        %v756 = vadd.f32 1e-05, %v755
        %757 = vmatmul.f32.gmra.mxu0 %v719
        %v758 = vpop.f32.mrf.mxu0
        %v759 = vadd.f32 1e-05, %v758
        %760 = vdwg.mxu0
        %v761 = vrsqrt.pop %v738
        %v762 = vmul.f32 %v761, %v738
        %v763 = vmul.f32 %v762, %v761
        %v764 = vmul.f32 0.5, %v763
        %v765 = vsub.f32 1.5, %v764
        %v766 = vmul.f32 %v761, %v765
        %vm767 = vweird.f32 %v738
        %vm768 = vweird.f32 %v761
        %vm769 = vmor %vm767, %vm768
        %v770 = vsel %vm769, %v761, %v766
        %v771 = vrsqrt.pop %v741
        %v772 = vmul.f32 %v771, %v741
        %v773 = vmul.f32 %v772, %v771
        %v774 = vmul.f32 0.5, %v773
        %v775 = vsub.f32 1.5, %v774
        %v776 = vmul.f32 %v771, %v775
        %vm777 = vweird.f32 %v741
        %vm778 = vweird.f32 %v771
        %vm779 = vmor %vm777, %vm778
        %v780 = vsel %vm779, %v771, %v776
        %v781 = vrsqrt.pop %v744
        %v782 = vmul.f32 %v781, %v744
        %v783 = vmul.f32 %v782, %v781
        %v784 = vmul.f32 0.5, %v783
        %v785 = vsub.f32 1.5, %v784
        %v786 = vmul.f32 %v781, %v785
        %vm787 = vweird.f32 %v744
        %vm788 = vweird.f32 %v781
        %vm789 = vmor %vm787, %vm788
        %v790 = vsel %vm789, %v781, %v786
        %v791 = vrsqrt.pop %v747
        %v792 = vmul.f32 %v791, %v747
        %v793 = vmul.f32 %v792, %v791
        %v794 = vmul.f32 0.5, %v793
        %v795 = vsub.f32 1.5, %v794
        %v796 = vmul.f32 %v791, %v795
        %vm797 = vweird.f32 %v747
        %vm798 = vweird.f32 %v791
        %vm799 = vmor %vm797, %vm798
        %v800 = vsel %vm799, %v791, %v796
        %v801 = vrsqrt.pop %v750
        %v802 = vmul.f32 %v801, %v750
        %v803 = vmul.f32 %v802, %v801
        %v804 = vmul.f32 0.5, %v803
        %v805 = vsub.f32 1.5, %v804
        %v806 = vmul.f32 %v801, %v805
        %vm807 = vweird.f32 %v750
        %vm808 = vweird.f32 %v801
        %vm809 = vmor %vm807, %vm808
        %v810 = vsel %vm809, %v801, %v806
        %v811 = vrsqrt.pop %v753
        %v812 = vmul.f32 %v811, %v753
        %v813 = vmul.f32 %v812, %v811
        %v814 = vmul.f32 0.5, %v813
        %v815 = vsub.f32 1.5, %v814
        %v816 = vmul.f32 %v811, %v815
        %vm817 = vweird.f32 %v753
        %vm818 = vweird.f32 %v811
        %vm819 = vmor %vm817, %vm818
        %v820 = vsel %vm819, %v811, %v816
        %v821 = vrsqrt.pop %v756
        %v822 = vmul.f32 %v821, %v756
        %v823 = vmul.f32 %v822, %v821
        %v824 = vmul.f32 0.5, %v823
        %v825 = vsub.f32 1.5, %v824
        %v826 = vmul.f32 %v821, %v825
        %vm827 = vweird.f32 %v756
        %vm828 = vweird.f32 %v821
        %vm829 = vmor %vm827, %vm828
        %v830 = vsel %vm829, %v821, %v826
        %v831 = vrsqrt.pop %v759
        %v832 = vmul.f32 %v831, %v759
        %v833 = vmul.f32 %v832, %v831
        %v834 = vmul.f32 0.5, %v833
        %v835 = vsub.f32 1.5, %v834
        %v836 = vmul.f32 %v831, %v835
        %vm837 = vweird.f32 %v759
        %vm838 = vweird.f32 %v831
        %vm839 = vmor %vm837, %vm838
        %v840 = vsel %vm839, %v831, %v836
        %v841 = vmul.f32 %v704, %v770
        %v842 = vmul.f32 %v705, %v780
        %v843 = vmul.f32 %v706, %v790
        %v844 = vmul.f32 %v707, %v800
        %v845 = vmul.f32 %v708, %v810
        %v846 = vmul.f32 %v709, %v820
        %v847 = vmul.f32 %v710, %v830
        %v848 = vmul.f32 %v711, %v840
        %v850 = vperm.slane %v366, 0
        %v852 = vmul.f32 %v841, %v850
        %v853 = vmul.f32 %v842, %v850
        %v854 = vmul.f32 %v843, %v850
        %v855 = vmul.f32 %v844, %v850
        %v856 = vmul.f32 %v845, %v850
        %v857 = vmul.f32 %v846, %v850
        %v858 = vmul.f32 %v847, %v850
        %v859 = vmul.f32 %v848, %v850
        %v861 = vperm.slane %v367, 0
        %v863 = vadd.f32 %v852, %v861
        %v864 = vadd.f32 %v853, %v861
        %v865 = vadd.f32 %v854, %v861
        %v866 = vadd.f32 %v855, %v861
        %v867 = vadd.f32 %v856, %v861
        %v868 = vadd.f32 %v857, %v861
        %v869 = vadd.f32 %v858, %v861
        %v870 = vadd.f32 %v859, %v861
        %v871 = vmax.f32 %v863, 0.0
        %v872 = vmax.f32 %v864, 0.0
        %v873 = vmax.f32 %v865, 0.0
        %v874 = vmax.f32 %v866, 0.0
        %v875 = vmax.f32 %v867, 0.0
        %v876 = vmax.f32 %v868, 0.0
        %v877 = vmax.f32 %v869, 0.0
        %v878 = vmax.f32 %v870, 0.0
        %v879 = vadd.f32 %v871, %v872
        %v880 = vadd.f32 %v879, %v873
        %v881 = vadd.f32 %v880, %v874
        %v882 = vadd.f32 %v881, %v875
        %v883 = vadd.f32 %v882, %v876
        %v884 = vadd.f32 %v883, %v877
        %v885 = vadd.f32 %v884, %v878
        %v886 = vrot.slane %v885, 4
        %v887 = vadd.f32 %v885, %v886
        %v888 = vrot.slane %v887, 2
        %v889 = vadd.f32 %v887, %v888
        %v890 = vrot.slane %v889, 1
        %v891 = vadd.f32 %v889, %v890
        %v892 = vadd.f32 %v891, 0.0
        %s893 = scalar_lea.vmem [#allocation2], 192
        %v894 = vld [vmem:[%s893 + $0xf] sm:$0xff]
        %v895 = vld [vmem:[%s893 + $0x17] sm:$0xff]
        %v896 = vld [vmem:[%s893 + $0x3f] sm:$0xff]
        %v897 = vld [vmem:[%s893 + $0x47] sm:$0xff]
        %v898 = vld [vmem:[%s893 + $0x6f] sm:$0xff]
        %v899 = vld [vmem:[%s893 + $0x77] sm:$0xff]
        %v900 = vld [vmem:[%s893 + $0x9f] sm:$0xff]
        %v901 = vld [vmem:[%s893 + $0xa7] sm:$0xff]
        %v902 = vld [vmem:[%s893 + $0xcf] sm:$0xff]
        %v903 = vld [vmem:[%s893 + $0xd7] sm:$0xff]
        %v904 = vld [vmem:[%s893 + $0xff] sm:$0xff]
        %v905 = vld [vmem:[%s893 + $0x107] sm:$0xff]
        %v906 = vmul.f32 %v894, %v494
        %v907 = vmul.f32 %v895, %v494
        %v908 = vmul.f32 %v896, %v494
        %v909 = vmul.f32 %v897, %v494
        %v910 = vmul.f32 %v898, %v494
        %v911 = vmul.f32 %v899, %v494
        %v912 = vmul.f32 %v900, %v494
        %v913 = vmul.f32 %v901, %v494
        %v914 = vmul.f32 %v896, %v503
        %v915 = vmul.f32 %v897, %v503
        %v916 = vmul.f32 %v898, %v503
        %v917 = vmul.f32 %v899, %v503
        %v918 = vmul.f32 %v900, %v503
        %v919 = vmul.f32 %v901, %v503
        %v920 = vmul.f32 %v902, %v503
        %v921 = vmul.f32 %v903, %v503
        %v922 = vadd.f32 %v906, %v914
        %v923 = vadd.f32 %v907, %v915
        %v924 = vadd.f32 %v908, %v916
        %v925 = vadd.f32 %v909, %v917
        %v926 = vadd.f32 %v910, %v918
        %v927 = vadd.f32 %v911, %v919
        %v928 = vadd.f32 %v912, %v920
        %v929 = vadd.f32 %v913, %v921
        %v930 = vmul.f32 %v898, %v520
        %v931 = vmul.f32 %v899, %v520
        %v932 = vmul.f32 %v900, %v520
        %v933 = vmul.f32 %v901, %v520
        %v934 = vmul.f32 %v902, %v520
        %v935 = vmul.f32 %v903, %v520
        %v936 = vmul.f32 %v904, %v520
        %v937 = vmul.f32 %v905, %v520
        %v938 = vadd.f32 %v922, %v930
        %v939 = vadd.f32 %v923, %v931
        %v940 = vadd.f32 %v924, %v932
        %v941 = vadd.f32 %v925, %v933
        %v942 = vadd.f32 %v926, %v934
        %v943 = vadd.f32 %v927, %v935
        %v944 = vadd.f32 %v928, %v936
        %v945 = vadd.f32 %v929, %v937
        %v946 = vld [vmem:[%s893 + $0x10] sm:$0xff]
        %v947 = vld [vmem:[%s893 + $0x18] sm:$0xff]
        %v948 = vld [vmem:[%s893 + $0x40] sm:$0xff]
        %v949 = vld [vmem:[%s893 + $0x48] sm:$0xff]
        %v950 = vld [vmem:[%s893 + $0x70] sm:$0xff]
        %v951 = vld [vmem:[%s893 + $0x78] sm:$0xff]
        %v952 = vld [vmem:[%s893 + $0xa0] sm:$0xff]
        %v953 = vld [vmem:[%s893 + $0xa8] sm:$0xff]
        %v954 = vld [vmem:[%s893 + $0xd0] sm:$0xff]
        %v955 = vld [vmem:[%s893 + $0xd8] sm:$0xff]
        %v956 = vld [vmem:[%s893 + $0x100] sm:$0xff]
        %v957 = vld [vmem:[%s893 + $0x108] sm:$0xff]
        %v958 = vmul.f32 %v946, %v549
        %v959 = vmul.f32 %v947, %v549
        %v960 = vmul.f32 %v948, %v549
        %v961 = vmul.f32 %v949, %v549
        %v962 = vmul.f32 %v950, %v549
        %v963 = vmul.f32 %v951, %v549
        %v964 = vmul.f32 %v952, %v549
        %v965 = vmul.f32 %v953, %v549
        %v966 = vadd.f32 %v938, %v958
        %v967 = vadd.f32 %v939, %v959
        %v968 = vadd.f32 %v940, %v960
        %v969 = vadd.f32 %v941, %v961
        %v970 = vadd.f32 %v942, %v962
        %v971 = vadd.f32 %v943, %v963
        %v972 = vadd.f32 %v944, %v964
        %v973 = vadd.f32 %v945, %v965
        %v974 = vmul.f32 %v948, %v566
        %v975 = vmul.f32 %v949, %v566
        %v976 = vmul.f32 %v950, %v566
        %v977 = vmul.f32 %v951, %v566
        %v978 = vmul.f32 %v952, %v566
        %v979 = vmul.f32 %v953, %v566
        %v980 = vmul.f32 %v954, %v566
        %v981 = vmul.f32 %v955, %v566
        %v982 = vadd.f32 %v966, %v974
        %v983 = vadd.f32 %v967, %v975
        %v984 = vadd.f32 %v968, %v976
        %v985 = vadd.f32 %v969, %v977
        %v986 = vadd.f32 %v970, %v978
        %v987 = vadd.f32 %v971, %v979
        %v988 = vadd.f32 %v972, %v980
        %v989 = vadd.f32 %v973, %v981
        %v990 = vmul.f32 %v950, %v583
        %v991 = vmul.f32 %v951, %v583
        %v992 = vmul.f32 %v952, %v583
        %v993 = vmul.f32 %v953, %v583
        %v994 = vmul.f32 %v954, %v583
        %v995 = vmul.f32 %v955, %v583
        %v996 = vmul.f32 %v956, %v583
        %v997 = vmul.f32 %v957, %v583
        %v998 = vadd.f32 %v982, %v990
        %v999 = vadd.f32 %v983, %v991
        %v1000 = vadd.f32 %v984, %v992
        %v1001 = vadd.f32 %v985, %v993
        %v1002 = vadd.f32 %v986, %v994
        %v1003 = vadd.f32 %v987, %v995
        %v1004 = vadd.f32 %v988, %v996
        %v1005 = vadd.f32 %v989, %v997
        %v1006 = vld [vmem:[%s893 + $0x11] sm:$0xff]
        %v1007 = vld [vmem:[%s893 + $0x19] sm:$0xff]
        %v1008 = vld [vmem:[%s893 + $0x41] sm:$0xff]
        %v1009 = vld [vmem:[%s893 + $0x49] sm:$0xff]
        %v1010 = vld [vmem:[%s893 + $0x71] sm:$0xff]
        %v1011 = vld [vmem:[%s893 + $0x79] sm:$0xff]
        %v1012 = vld [vmem:[%s893 + $0xa1] sm:$0xff]
        %v1013 = vld [vmem:[%s893 + $0xa9] sm:$0xff]
        %v1014 = vld [vmem:[%s893 + $0xd1] sm:$0xff]
        %v1015 = vld [vmem:[%s893 + $0xd9] sm:$0xff]
        %v1016 = vld [vmem:[%s893 + $0x101] sm:$0xff]
        %v1017 = vld [vmem:[%s893 + $0x109] sm:$0xff]
        %v1018 = vmul.f32 %v1006, %v612
        %v1019 = vmul.f32 %v1007, %v612
        %v1020 = vmul.f32 %v1008, %v612
        %v1021 = vmul.f32 %v1009, %v612
        %v1022 = vmul.f32 %v1010, %v612
        %v1023 = vmul.f32 %v1011, %v612
        %v1024 = vmul.f32 %v1012, %v612
        %v1025 = vmul.f32 %v1013, %v612
        %v1026 = vadd.f32 %v998, %v1018
        %v1027 = vadd.f32 %v999, %v1019
        %v1028 = vadd.f32 %v1000, %v1020
        %v1029 = vadd.f32 %v1001, %v1021
        %v1030 = vadd.f32 %v1002, %v1022
        %v1031 = vadd.f32 %v1003, %v1023
        %v1032 = vadd.f32 %v1004, %v1024
        %v1033 = vadd.f32 %v1005, %v1025
        %v1034 = vmul.f32 %v1008, %v629
        %v1035 = vmul.f32 %v1009, %v629
        %v1036 = vmul.f32 %v1010, %v629
        %v1037 = vmul.f32 %v1011, %v629
        %v1038 = vmul.f32 %v1012, %v629
        %v1039 = vmul.f32 %v1013, %v629
        %v1040 = vmul.f32 %v1014, %v629
        %v1041 = vmul.f32 %v1015, %v629
        %v1042 = vadd.f32 %v1026, %v1034
        %v1043 = vadd.f32 %v1027, %v1035
        %v1044 = vadd.f32 %v1028, %v1036
        %v1045 = vadd.f32 %v1029, %v1037
        %v1046 = vadd.f32 %v1030, %v1038
        %v1047 = vadd.f32 %v1031, %v1039
        %v1048 = vadd.f32 %v1032, %v1040
        %v1049 = vadd.f32 %v1033, %v1041
        %v1050 = vmul.f32 %v1010, %v646
        %v1051 = vmul.f32 %v1011, %v646
        %v1052 = vmul.f32 %v1012, %v646
        %v1053 = vmul.f32 %v1013, %v646
        %v1054 = vmul.f32 %v1014, %v646
        %v1055 = vmul.f32 %v1015, %v646
        %v1056 = vmul.f32 %v1016, %v646
        %v1057 = vmul.f32 %v1017, %v646
        %v1058 = vadd.f32 %v1042, %v1050
        %v1059 = vadd.f32 %v1043, %v1051
        %v1060 = vadd.f32 %v1044, %v1052
        %v1061 = vadd.f32 %v1045, %v1053
        %v1062 = vadd.f32 %v1046, %v1054
        %v1063 = vadd.f32 %v1047, %v1055
        %v1064 = vadd.f32 %v1048, %v1056
        %v1065 = vadd.f32 %v1049, %v1057
        %1066 = vmatpush.msra.mxu0 %v365
        %1067 = vmatpush.msra.mxu0 %v364
        %1068 = vmatpush.msra.mxu0 %v363
        %1069 = vmatpush.msra.mxu0 %v362
        %1070 = vmatpush.msra.mxu0 %v361
        %1071 = vmatpush.msra.mxu0 %v360
        %1072 = vmatpush.msra.mxu0 %v359
        %1073 = vmatpush.msra.mxu0 %v358
        %1074 = vmatpush.msra.mxu0 %v357
        %1075 = vmatpush.msra.mxu0 %v356
        %1076 = vmatpush.msra.mxu0 %v355
        %1077 = vmatpush.msra.mxu0 %v354
        %1078 = vmatpush.msra.mxu0 %v353
        %1079 = vmatpush.msra.mxu0 %v352
        %1080 = vmatpush.msra.mxu0 %v351
        %1081 = vmatpush.msra.mxu0 %v350
        %1082 = vmatmul.f32.gmra.mxu0 %v1058
        %v1083 = vpop.f32.mrf.mxu0
        %v1084 = vadd.f32 0.0, %v1083
        %1085 = vmatmul.f32.gmra.mxu0 %v1059
        %v1086 = vpop.f32.mrf.mxu0
        %v1087 = vadd.f32 0.0, %v1086
        %1088 = vmatmul.f32.gmra.mxu0 %v1060
        %v1089 = vpop.f32.mrf.mxu0
        %v1090 = vadd.f32 0.0, %v1089
        %1091 = vmatmul.f32.gmra.mxu0 %v1061
        %v1092 = vpop.f32.mrf.mxu0
        %v1093 = vadd.f32 0.0, %v1092
        %1094 = vmatmul.f32.gmra.mxu0 %v1062
        %v1095 = vpop.f32.mrf.mxu0
        %v1096 = vadd.f32 0.0, %v1095
        %1097 = vmatmul.f32.gmra.mxu0 %v1063
        %v1098 = vpop.f32.mrf.mxu0
        %v1099 = vadd.f32 0.0, %v1098
        %1100 = vmatmul.f32.gmra.mxu0 %v1064
        %v1101 = vpop.f32.mrf.mxu0
        %v1102 = vadd.f32 0.0, %v1101
        %1103 = vmatmul.f32.gmra.mxu0 %v1065
        %v1104 = vpop.f32.mrf.mxu0
        %v1105 = vadd.f32 0.0, %v1104
        %1106 = vdwg.mxu0
        %v1107 = vsub.f32 %v1058, %v1084
        %v1108 = vsub.f32 %v1059, %v1087
        %v1109 = vsub.f32 %v1060, %v1090
        %v1110 = vsub.f32 %v1061, %v1093
        %v1111 = vsub.f32 %v1062, %v1096
        %v1112 = vsub.f32 %v1063, %v1099
        %v1113 = vsub.f32 %v1064, %v1102
        %v1114 = vsub.f32 %v1065, %v1105
        %v1115 = vmul.f32 %v1107, %v1107
        %v1116 = vmul.f32 %v1108, %v1108
        %v1117 = vmul.f32 %v1109, %v1109
        %v1118 = vmul.f32 %v1110, %v1110
        %v1119 = vmul.f32 %v1111, %v1111
        %v1120 = vmul.f32 %v1112, %v1112
        %v1121 = vmul.f32 %v1113, %v1113
        %v1122 = vmul.f32 %v1114, %v1114
        %1123 = vmatpush.msra.mxu0 %v365
        %1124 = vmatpush.msra.mxu0 %v364
        %1125 = vmatpush.msra.mxu0 %v363
        %1126 = vmatpush.msra.mxu0 %v362
        %1127 = vmatpush.msra.mxu0 %v361
        %1128 = vmatpush.msra.mxu0 %v360
        %1129 = vmatpush.msra.mxu0 %v359
        %1130 = vmatpush.msra.mxu0 %v358
        %1131 = vmatpush.msra.mxu0 %v357
        %1132 = vmatpush.msra.mxu0 %v356
        %1133 = vmatpush.msra.mxu0 %v355
        %1134 = vmatpush.msra.mxu0 %v354
        %1135 = vmatpush.msra.mxu0 %v353
        %1136 = vmatpush.msra.mxu0 %v352
        %1137 = vmatpush.msra.mxu0 %v351
        %1138 = vmatpush.msra.mxu0 %v350
        %1139 = vmatmul.f32.gmra.mxu0 %v1115
        %v1140 = vpop.f32.mrf.mxu0
        %v1141 = vadd.f32 1e-05, %v1140
        %1142 = vmatmul.f32.gmra.mxu0 %v1116
        %v1143 = vpop.f32.mrf.mxu0
        %v1144 = vadd.f32 1e-05, %v1143
        %1145 = vmatmul.f32.gmra.mxu0 %v1117
        %v1146 = vpop.f32.mrf.mxu0
        %v1147 = vadd.f32 1e-05, %v1146
        %1148 = vmatmul.f32.gmra.mxu0 %v1118
        %v1149 = vpop.f32.mrf.mxu0
        %v1150 = vadd.f32 1e-05, %v1149
        %1151 = vmatmul.f32.gmra.mxu0 %v1119
        %v1152 = vpop.f32.mrf.mxu0
        %v1153 = vadd.f32 1e-05, %v1152
        %1154 = vmatmul.f32.gmra.mxu0 %v1120
        %v1155 = vpop.f32.mrf.mxu0
        %v1156 = vadd.f32 1e-05, %v1155
        %1157 = vmatmul.f32.gmra.mxu0 %v1121
        %v1158 = vpop.f32.mrf.mxu0
        %v1159 = vadd.f32 1e-05, %v1158
        %1160 = vmatmul.f32.gmra.mxu0 %v1122
        %v1161 = vpop.f32.mrf.mxu0
        %v1162 = vadd.f32 1e-05, %v1161
        %1163 = vdwg.mxu0
        %v1164 = vrsqrt.pop %v1141
        %v1165 = vmul.f32 %v1164, %v1141
        %v1166 = vmul.f32 %v1165, %v1164
        %v1167 = vmul.f32 0.5, %v1166
        %v1168 = vsub.f32 1.5, %v1167
        %v1169 = vmul.f32 %v1164, %v1168
        %vm1170 = vweird.f32 %v1141
        %vm1171 = vweird.f32 %v1164
        %vm1172 = vmor %vm1170, %vm1171
        %v1173 = vsel %vm1172, %v1164, %v1169
        %v1174 = vrsqrt.pop %v1144
        %v1175 = vmul.f32 %v1174, %v1144
        %v1176 = vmul.f32 %v1175, %v1174
        %v1177 = vmul.f32 0.5, %v1176
        %v1178 = vsub.f32 1.5, %v1177
        %v1179 = vmul.f32 %v1174, %v1178
        %vm1180 = vweird.f32 %v1144
        %vm1181 = vweird.f32 %v1174
        %vm1182 = vmor %vm1180, %vm1181
        %v1183 = vsel %vm1182, %v1174, %v1179
        %v1184 = vrsqrt.pop %v1147
        %v1185 = vmul.f32 %v1184, %v1147
        %v1186 = vmul.f32 %v1185, %v1184
        %v1187 = vmul.f32 0.5, %v1186
        %v1188 = vsub.f32 1.5, %v1187
        %v1189 = vmul.f32 %v1184, %v1188
        %vm1190 = vweird.f32 %v1147
        %vm1191 = vweird.f32 %v1184
        %vm1192 = vmor %vm1190, %vm1191
        %v1193 = vsel %vm1192, %v1184, %v1189
        %v1194 = vrsqrt.pop %v1150
        %v1195 = vmul.f32 %v1194, %v1150
        %v1196 = vmul.f32 %v1195, %v1194
        %v1197 = vmul.f32 0.5, %v1196
        %v1198 = vsub.f32 1.5, %v1197
        %v1199 = vmul.f32 %v1194, %v1198
        %vm1200 = vweird.f32 %v1150
        %vm1201 = vweird.f32 %v1194
        %vm1202 = vmor %vm1200, %vm1201
        %v1203 = vsel %vm1202, %v1194, %v1199
        %v1204 = vrsqrt.pop %v1153
        %v1205 = vmul.f32 %v1204, %v1153
        %v1206 = vmul.f32 %v1205, %v1204
        %v1207 = vmul.f32 0.5, %v1206
        %v1208 = vsub.f32 1.5, %v1207
        %v1209 = vmul.f32 %v1204, %v1208
        %vm1210 = vweird.f32 %v1153
        %vm1211 = vweird.f32 %v1204
        %vm1212 = vmor %vm1210, %vm1211
        %v1213 = vsel %vm1212, %v1204, %v1209
        %v1214 = vrsqrt.pop %v1156
        %v1215 = vmul.f32 %v1214, %v1156
        %v1216 = vmul.f32 %v1215, %v1214
        %v1217 = vmul.f32 0.5, %v1216
        %v1218 = vsub.f32 1.5, %v1217
        %v1219 = vmul.f32 %v1214, %v1218
        %vm1220 = vweird.f32 %v1156
        %vm1221 = vweird.f32 %v1214
        %vm1222 = vmor %vm1220, %vm1221
        %v1223 = vsel %vm1222, %v1214, %v1219
        %v1224 = vrsqrt.pop %v1159
        %v1225 = vmul.f32 %v1224, %v1159
        %v1226 = vmul.f32 %v1225, %v1224
        %v1227 = vmul.f32 0.5, %v1226
        %v1228 = vsub.f32 1.5, %v1227
        %v1229 = vmul.f32 %v1224, %v1228
        %vm1230 = vweird.f32 %v1159
        %vm1231 = vweird.f32 %v1224
        %vm1232 = vmor %vm1230, %vm1231
        %v1233 = vsel %vm1232, %v1224, %v1229
        %v1234 = vrsqrt.pop %v1162
        %v1235 = vmul.f32 %v1234, %v1162
        %v1236 = vmul.f32 %v1235, %v1234
        %v1237 = vmul.f32 0.5, %v1236
        %v1238 = vsub.f32 1.5, %v1237
        %v1239 = vmul.f32 %v1234, %v1238
        %vm1240 = vweird.f32 %v1162
        %vm1241 = vweird.f32 %v1234
        %vm1242 = vmor %vm1240, %vm1241
        %v1243 = vsel %vm1242, %v1234, %v1239
        %v1244 = vmul.f32 %v1107, %v1173
        %v1245 = vmul.f32 %v1108, %v1183
        %v1246 = vmul.f32 %v1109, %v1193
        %v1247 = vmul.f32 %v1110, %v1203
        %v1248 = vmul.f32 %v1111, %v1213
        %v1249 = vmul.f32 %v1112, %v1223
        %v1250 = vmul.f32 %v1113, %v1233
        %v1251 = vmul.f32 %v1114, %v1243
        %v1252 = vmul.f32 %v1244, %v850
        %v1253 = vmul.f32 %v1245, %v850
        %v1254 = vmul.f32 %v1246, %v850
        %v1255 = vmul.f32 %v1247, %v850
        %v1256 = vmul.f32 %v1248, %v850
        %v1257 = vmul.f32 %v1249, %v850
        %v1258 = vmul.f32 %v1250, %v850
        %v1259 = vmul.f32 %v1251, %v850
        %v1260 = vadd.f32 %v1252, %v861
        %v1261 = vadd.f32 %v1253, %v861
        %v1262 = vadd.f32 %v1254, %v861
        %v1263 = vadd.f32 %v1255, %v861
        %v1264 = vadd.f32 %v1256, %v861
        %v1265 = vadd.f32 %v1257, %v861
        %v1266 = vadd.f32 %v1258, %v861
        %v1267 = vadd.f32 %v1259, %v861
        %v1268 = vmax.f32 %v1260, 0.0
        %v1269 = vmax.f32 %v1261, 0.0
        %v1270 = vmax.f32 %v1262, 0.0
        %v1271 = vmax.f32 %v1263, 0.0
        %v1272 = vmax.f32 %v1264, 0.0
        %v1273 = vmax.f32 %v1265, 0.0
        %v1274 = vmax.f32 %v1266, 0.0
        %v1275 = vmax.f32 %v1267, 0.0
        %v1276 = vadd.f32 %v1268, %v1269
        %v1277 = vadd.f32 %v1276, %v1270
        %v1278 = vadd.f32 %v1277, %v1271
        %v1279 = vadd.f32 %v1278, %v1272
        %v1280 = vadd.f32 %v1279, %v1273
        %v1281 = vadd.f32 %v1280, %v1274
        %v1282 = vadd.f32 %v1281, %v1275
        %v1283 = vrot.slane %v1282, 4
        %v1284 = vadd.f32 %v1282, %v1283
        %v1285 = vrot.slane %v1284, 2
        %v1286 = vadd.f32 %v1284, %v1285
        %v1287 = vrot.slane %v1286, 1
        %v1288 = vadd.f32 %v1286, %v1287
        %v1289 = vadd.f32 %v892, %v1288
        %s1290 = scalar_lea.vmem [#allocation2], 384
        %v1291 = vld [vmem:[%s1290 + $0xf] sm:$0xff]
        %v1292 = vld [vmem:[%s1290 + $0x17] sm:$0xff]
        %v1293 = vld [vmem:[%s1290 + $0x3f] sm:$0xff]
        %v1294 = vld [vmem:[%s1290 + $0x47] sm:$0xff]
        %v1295 = vld [vmem:[%s1290 + $0x6f] sm:$0xff]
        %v1296 = vld [vmem:[%s1290 + $0x77] sm:$0xff]
        %v1297 = vld [vmem:[%s1290 + $0x9f] sm:$0xff]
        %v1298 = vld [vmem:[%s1290 + $0xa7] sm:$0xff]
        %v1299 = vld [vmem:[%s1290 + $0xcf] sm:$0xff]
        %v1300 = vld [vmem:[%s1290 + $0xd7] sm:$0xff]
        %v1301 = vld [vmem:[%s1290 + $0xff] sm:$0xff]
        %v1302 = vld [vmem:[%s1290 + $0x107] sm:$0xff]
        %v1303 = vmul.f32 %v1291, %v494
        %v1304 = vmul.f32 %v1292, %v494
        %v1305 = vmul.f32 %v1293, %v494
        %v1306 = vmul.f32 %v1294, %v494
        %v1307 = vmul.f32 %v1295, %v494
        %v1308 = vmul.f32 %v1296, %v494
        %v1309 = vmul.f32 %v1297, %v494
        %v1310 = vmul.f32 %v1298, %v494
        %v1311 = vmul.f32 %v1293, %v503
        %v1312 = vmul.f32 %v1294, %v503
        %v1313 = vmul.f32 %v1295, %v503
        %v1314 = vmul.f32 %v1296, %v503
        %v1315 = vmul.f32 %v1297, %v503
        %v1316 = vmul.f32 %v1298, %v503
        %v1317 = vmul.f32 %v1299, %v503
        %v1318 = vmul.f32 %v1300, %v503
        %v1319 = vadd.f32 %v1303, %v1311
        %v1320 = vadd.f32 %v1304, %v1312
        %v1321 = vadd.f32 %v1305, %v1313
        %v1322 = vadd.f32 %v1306, %v1314
        %v1323 = vadd.f32 %v1307, %v1315
        %v1324 = vadd.f32 %v1308, %v1316
        %v1325 = vadd.f32 %v1309, %v1317
        %v1326 = vadd.f32 %v1310, %v1318
        %v1327 = vmul.f32 %v1295, %v520
        %v1328 = vmul.f32 %v1296, %v520
        %v1329 = vmul.f32 %v1297, %v520
        %v1330 = vmul.f32 %v1298, %v520
        %v1331 = vmul.f32 %v1299, %v520
        %v1332 = vmul.f32 %v1300, %v520
        %v1333 = vmul.f32 %v1301, %v520
        %v1334 = vmul.f32 %v1302, %v520
        %v1335 = vadd.f32 %v1319, %v1327
        %v1336 = vadd.f32 %v1320, %v1328
        %v1337 = vadd.f32 %v1321, %v1329
        %v1338 = vadd.f32 %v1322, %v1330
        %v1339 = vadd.f32 %v1323, %v1331
        %v1340 = vadd.f32 %v1324, %v1332
        %v1341 = vadd.f32 %v1325, %v1333
        %v1342 = vadd.f32 %v1326, %v1334
        %v1343 = vld [vmem:[%s1290 + $0x10] sm:$0xff]
        %v1344 = vld [vmem:[%s1290 + $0x18] sm:$0xff]
        %v1345 = vld [vmem:[%s1290 + $0x40] sm:$0xff]
        %v1346 = vld [vmem:[%s1290 + $0x48] sm:$0xff]
        %v1347 = vld [vmem:[%s1290 + $0x70] sm:$0xff]
        %v1348 = vld [vmem:[%s1290 + $0x78] sm:$0xff]
        %v1349 = vld [vmem:[%s1290 + $0xa0] sm:$0xff]
        %v1350 = vld [vmem:[%s1290 + $0xa8] sm:$0xff]
        %v1351 = vld [vmem:[%s1290 + $0xd0] sm:$0xff]
        %v1352 = vld [vmem:[%s1290 + $0xd8] sm:$0xff]
        %v1353 = vld [vmem:[%s1290 + $0x100] sm:$0xff]
        %v1354 = vld [vmem:[%s1290 + $0x108] sm:$0xff]
        %v1355 = vmul.f32 %v1343, %v549
        %v1356 = vmul.f32 %v1344, %v549
        %v1357 = vmul.f32 %v1345, %v549
        %v1358 = vmul.f32 %v1346, %v549
        %v1359 = vmul.f32 %v1347, %v549
        %v1360 = vmul.f32 %v1348, %v549
        %v1361 = vmul.f32 %v1349, %v549
        %v1362 = vmul.f32 %v1350, %v549
        %v1363 = vadd.f32 %v1335, %v1355
        %v1364 = vadd.f32 %v1336, %v1356
        %v1365 = vadd.f32 %v1337, %v1357
        %v1366 = vadd.f32 %v1338, %v1358
        %v1367 = vadd.f32 %v1339, %v1359
        %v1368 = vadd.f32 %v1340, %v1360
        %v1369 = vadd.f32 %v1341, %v1361
        %v1370 = vadd.f32 %v1342, %v1362
        %v1371 = vmul.f32 %v1345, %v566
        %v1372 = vmul.f32 %v1346, %v566
        %v1373 = vmul.f32 %v1347, %v566
        %v1374 = vmul.f32 %v1348, %v566
        %v1375 = vmul.f32 %v1349, %v566
        %v1376 = vmul.f32 %v1350, %v566
        %v1377 = vmul.f32 %v1351, %v566
        %v1378 = vmul.f32 %v1352, %v566
        %v1379 = vadd.f32 %v1363, %v1371
        %v1380 = vadd.f32 %v1364, %v1372
        %v1381 = vadd.f32 %v1365, %v1373
        %v1382 = vadd.f32 %v1366, %v1374
        %v1383 = vadd.f32 %v1367, %v1375
        %v1384 = vadd.f32 %v1368, %v1376
        %v1385 = vadd.f32 %v1369, %v1377
        %v1386 = vadd.f32 %v1370, %v1378
        %v1387 = vmul.f32 %v1347, %v583
        %v1388 = vmul.f32 %v1348, %v583
        %v1389 = vmul.f32 %v1349, %v583
        %v1390 = vmul.f32 %v1350, %v583
        %v1391 = vmul.f32 %v1351, %v583
        %v1392 = vmul.f32 %v1352, %v583
        %v1393 = vmul.f32 %v1353, %v583
        %v1394 = vmul.f32 %v1354, %v583
        %v1395 = vadd.f32 %v1379, %v1387
        %v1396 = vadd.f32 %v1380, %v1388
        %v1397 = vadd.f32 %v1381, %v1389
        %v1398 = vadd.f32 %v1382, %v1390
        %v1399 = vadd.f32 %v1383, %v1391
        %v1400 = vadd.f32 %v1384, %v1392
        %v1401 = vadd.f32 %v1385, %v1393
        %v1402 = vadd.f32 %v1386, %v1394
        %v1403 = vld [vmem:[%s1290 + $0x11] sm:$0xff]
        %v1404 = vld [vmem:[%s1290 + $0x19] sm:$0xff]
        %v1405 = vld [vmem:[%s1290 + $0x41] sm:$0xff]
        %v1406 = vld [vmem:[%s1290 + $0x49] sm:$0xff]
        %v1407 = vld [vmem:[%s1290 + $0x71] sm:$0xff]
        %v1408 = vld [vmem:[%s1290 + $0x79] sm:$0xff]
        %v1409 = vld [vmem:[%s1290 + $0xa1] sm:$0xff]
        %v1410 = vld [vmem:[%s1290 + $0xa9] sm:$0xff]
        %v1411 = vld [vmem:[%s1290 + $0xd1] sm:$0xff]
        %v1412 = vld [vmem:[%s1290 + $0xd9] sm:$0xff]
        %v1413 = vld [vmem:[%s1290 + $0x101] sm:$0xff]
        %v1414 = vld [vmem:[%s1290 + $0x109] sm:$0xff]
        %v1415 = vmul.f32 %v1403, %v612
        %v1416 = vmul.f32 %v1404, %v612
        %v1417 = vmul.f32 %v1405, %v612
        %v1418 = vmul.f32 %v1406, %v612
        %v1419 = vmul.f32 %v1407, %v612
        %v1420 = vmul.f32 %v1408, %v612
        %v1421 = vmul.f32 %v1409, %v612
        %v1422 = vmul.f32 %v1410, %v612
        %v1423 = vadd.f32 %v1395, %v1415
        %v1424 = vadd.f32 %v1396, %v1416
        %v1425 = vadd.f32 %v1397, %v1417
        %v1426 = vadd.f32 %v1398, %v1418
        %v1427 = vadd.f32 %v1399, %v1419
        %v1428 = vadd.f32 %v1400, %v1420
        %v1429 = vadd.f32 %v1401, %v1421
        %v1430 = vadd.f32 %v1402, %v1422
        %v1431 = vmul.f32 %v1405, %v629
        %v1432 = vmul.f32 %v1406, %v629
        %v1433 = vmul.f32 %v1407, %v629
        %v1434 = vmul.f32 %v1408, %v629
        %v1435 = vmul.f32 %v1409, %v629
        %v1436 = vmul.f32 %v1410, %v629
        %v1437 = vmul.f32 %v1411, %v629
        %v1438 = vmul.f32 %v1412, %v629
        %v1439 = vadd.f32 %v1423, %v1431
        %v1440 = vadd.f32 %v1424, %v1432
        %v1441 = vadd.f32 %v1425, %v1433
        %v1442 = vadd.f32 %v1426, %v1434
        %v1443 = vadd.f32 %v1427, %v1435
        %v1444 = vadd.f32 %v1428, %v1436
        %v1445 = vadd.f32 %v1429, %v1437
        %v1446 = vadd.f32 %v1430, %v1438
        %v1447 = vmul.f32 %v1407, %v646
        %v1448 = vmul.f32 %v1408, %v646
        %v1449 = vmul.f32 %v1409, %v646
        %v1450 = vmul.f32 %v1410, %v646
        %v1451 = vmul.f32 %v1411, %v646
        %v1452 = vmul.f32 %v1412, %v646
        %v1453 = vmul.f32 %v1413, %v646
        %v1454 = vmul.f32 %v1414, %v646
        %v1455 = vadd.f32 %v1439, %v1447
        %v1456 = vadd.f32 %v1440, %v1448
        %v1457 = vadd.f32 %v1441, %v1449
        %v1458 = vadd.f32 %v1442, %v1450
        %v1459 = vadd.f32 %v1443, %v1451
        %v1460 = vadd.f32 %v1444, %v1452
        %v1461 = vadd.f32 %v1445, %v1453
        %v1462 = vadd.f32 %v1446, %v1454
        %1463 = vmatpush.msra.mxu0 %v365
        %1464 = vmatpush.msra.mxu0 %v364
        %1465 = vmatpush.msra.mxu0 %v363
        %1466 = vmatpush.msra.mxu0 %v362
        %1467 = vmatpush.msra.mxu0 %v361
        %1468 = vmatpush.msra.mxu0 %v360
        %1469 = vmatpush.msra.mxu0 %v359
        %1470 = vmatpush.msra.mxu0 %v358
        %1471 = vmatpush.msra.mxu0 %v357
        %1472 = vmatpush.msra.mxu0 %v356
        %1473 = vmatpush.msra.mxu0 %v355
        %1474 = vmatpush.msra.mxu0 %v354
        %1475 = vmatpush.msra.mxu0 %v353
        %1476 = vmatpush.msra.mxu0 %v352
        %1477 = vmatpush.msra.mxu0 %v351
        %1478 = vmatpush.msra.mxu0 %v350
        %1479 = vmatmul.f32.gmra.mxu0 %v1455
        %v1480 = vpop.f32.mrf.mxu0
        %v1481 = vadd.f32 0.0, %v1480
        %1482 = vmatmul.f32.gmra.mxu0 %v1456
        %v1483 = vpop.f32.mrf.mxu0
        %v1484 = vadd.f32 0.0, %v1483
        %1485 = vmatmul.f32.gmra.mxu0 %v1457
        %v1486 = vpop.f32.mrf.mxu0
        %v1487 = vadd.f32 0.0, %v1486
        %1488 = vmatmul.f32.gmra.mxu0 %v1458
        %v1489 = vpop.f32.mrf.mxu0
        %v1490 = vadd.f32 0.0, %v1489
        %1491 = vmatmul.f32.gmra.mxu0 %v1459
        %v1492 = vpop.f32.mrf.mxu0
        %v1493 = vadd.f32 0.0, %v1492
        %1494 = vmatmul.f32.gmra.mxu0 %v1460
        %v1495 = vpop.f32.mrf.mxu0
        %v1496 = vadd.f32 0.0, %v1495
        %1497 = vmatmul.f32.gmra.mxu0 %v1461
        %v1498 = vpop.f32.mrf.mxu0
        %v1499 = vadd.f32 0.0, %v1498
        %1500 = vmatmul.f32.gmra.mxu0 %v1462
        %v1501 = vpop.f32.mrf.mxu0
        %v1502 = vadd.f32 0.0, %v1501
        %1503 = vdwg.mxu0
        %v1504 = vsub.f32 %v1455, %v1481
        %v1505 = vsub.f32 %v1456, %v1484
        %v1506 = vsub.f32 %v1457, %v1487
        %v1507 = vsub.f32 %v1458, %v1490
        %v1508 = vsub.f32 %v1459, %v1493
        %v1509 = vsub.f32 %v1460, %v1496
        %v1510 = vsub.f32 %v1461, %v1499
        %v1511 = vsub.f32 %v1462, %v1502
        %v1512 = vmul.f32 %v1504, %v1504
        %v1513 = vmul.f32 %v1505, %v1505
        %v1514 = vmul.f32 %v1506, %v1506
        %v1515 = vmul.f32 %v1507, %v1507
        %v1516 = vmul.f32 %v1508, %v1508
        %v1517 = vmul.f32 %v1509, %v1509
        %v1518 = vmul.f32 %v1510, %v1510
        %v1519 = vmul.f32 %v1511, %v1511
        %1520 = vmatpush.msra.mxu0 %v365
        %1521 = vmatpush.msra.mxu0 %v364
        %1522 = vmatpush.msra.mxu0 %v363
        %1523 = vmatpush.msra.mxu0 %v362
        %1524 = vmatpush.msra.mxu0 %v361
        %1525 = vmatpush.msra.mxu0 %v360
        %1526 = vmatpush.msra.mxu0 %v359
        %1527 = vmatpush.msra.mxu0 %v358
        %1528 = vmatpush.msra.mxu0 %v357
        %1529 = vmatpush.msra.mxu0 %v356
        %1530 = vmatpush.msra.mxu0 %v355
        %1531 = vmatpush.msra.mxu0 %v354
        %1532 = vmatpush.msra.mxu0 %v353
        %1533 = vmatpush.msra.mxu0 %v352
        %1534 = vmatpush.msra.mxu0 %v351
        %1535 = vmatpush.msra.mxu0 %v350
        %1536 = vmatmul.f32.gmra.mxu0 %v1512
        %v1537 = vpop.f32.mrf.mxu0
        %v1538 = vadd.f32 1e-05, %v1537
        %1539 = vmatmul.f32.gmra.mxu0 %v1513
        %v1540 = vpop.f32.mrf.mxu0
        %v1541 = vadd.f32 1e-05, %v1540
        %1542 = vmatmul.f32.gmra.mxu0 %v1514
        %v1543 = vpop.f32.mrf.mxu0
        %v1544 = vadd.f32 1e-05, %v1543
        %1545 = vmatmul.f32.gmra.mxu0 %v1515
        %v1546 = vpop.f32.mrf.mxu0
        %v1547 = vadd.f32 1e-05, %v1546
        %1548 = vmatmul.f32.gmra.mxu0 %v1516
        %v1549 = vpop.f32.mrf.mxu0
        %v1550 = vadd.f32 1e-05, %v1549
        %1551 = vmatmul.f32.gmra.mxu0 %v1517
        %v1552 = vpop.f32.mrf.mxu0
        %v1553 = vadd.f32 1e-05, %v1552
        %1554 = vmatmul.f32.gmra.mxu0 %v1518
        %v1555 = vpop.f32.mrf.mxu0
        %v1556 = vadd.f32 1e-05, %v1555
        %1557 = vmatmul.f32.gmra.mxu0 %v1519
        %v1558 = vpop.f32.mrf.mxu0
        %v1559 = vadd.f32 1e-05, %v1558
        %1560 = vdwg.mxu0
        %v1561 = vrsqrt.pop %v1538
        %v1562 = vmul.f32 %v1561, %v1538
        %v1563 = vmul.f32 %v1562, %v1561
        %v1564 = vmul.f32 0.5, %v1563
        %v1565 = vsub.f32 1.5, %v1564
        %v1566 = vmul.f32 %v1561, %v1565
        %vm1567 = vweird.f32 %v1538
        %vm1568 = vweird.f32 %v1561
        %vm1569 = vmor %vm1567, %vm1568
        %v1570 = vsel %vm1569, %v1561, %v1566
        %v1571 = vrsqrt.pop %v1541
        %v1572 = vmul.f32 %v1571, %v1541
        %v1573 = vmul.f32 %v1572, %v1571
        %v1574 = vmul.f32 0.5, %v1573
        %v1575 = vsub.f32 1.5, %v1574
        %v1576 = vmul.f32 %v1571, %v1575
        %vm1577 = vweird.f32 %v1541
        %vm1578 = vweird.f32 %v1571
        %vm1579 = vmor %vm1577, %vm1578
        %v1580 = vsel %vm1579, %v1571, %v1576
        %v1581 = vrsqrt.pop %v1544
        %v1582 = vmul.f32 %v1581, %v1544
        %v1583 = vmul.f32 %v1582, %v1581
        %v1584 = vmul.f32 0.5, %v1583
        %v1585 = vsub.f32 1.5, %v1584
        %v1586 = vmul.f32 %v1581, %v1585
        %vm1587 = vweird.f32 %v1544
        %vm1588 = vweird.f32 %v1581
        %vm1589 = vmor %vm1587, %vm1588
        %v1590 = vsel %vm1589, %v1581, %v1586
        %v1591 = vrsqrt.pop %v1547
        %v1592 = vmul.f32 %v1591, %v1547
        %v1593 = vmul.f32 %v1592, %v1591
        %v1594 = vmul.f32 0.5, %v1593
        %v1595 = vsub.f32 1.5, %v1594
        %v1596 = vmul.f32 %v1591, %v1595
        %vm1597 = vweird.f32 %v1547
        %vm1598 = vweird.f32 %v1591
        %vm1599 = vmor %vm1597, %vm1598
        %v1600 = vsel %vm1599, %v1591, %v1596
        %v1601 = vrsqrt.pop %v1550
        %v1602 = vmul.f32 %v1601, %v1550
        %v1603 = vmul.f32 %v1602, %v1601
        %v1604 = vmul.f32 0.5, %v1603
        %v1605 = vsub.f32 1.5, %v1604
        %v1606 = vmul.f32 %v1601, %v1605
        %vm1607 = vweird.f32 %v1550
        %vm1608 = vweird.f32 %v1601
        %vm1609 = vmor %vm1607, %vm1608
        %v1610 = vsel %vm1609, %v1601, %v1606
        %v1611 = vrsqrt.pop %v1553
        %v1612 = vmul.f32 %v1611, %v1553
        %v1613 = vmul.f32 %v1612, %v1611
        %v1614 = vmul.f32 0.5, %v1613
        %v1615 = vsub.f32 1.5, %v1614
        %v1616 = vmul.f32 %v1611, %v1615
        %vm1617 = vweird.f32 %v1553
        %vm1618 = vweird.f32 %v1611
        %vm1619 = vmor %vm1617, %vm1618
        %v1620 = vsel %vm1619, %v1611, %v1616
        %v1621 = vrsqrt.pop %v1556
        %v1622 = vmul.f32 %v1621, %v1556
        %v1623 = vmul.f32 %v1622, %v1621
        %v1624 = vmul.f32 0.5, %v1623
        %v1625 = vsub.f32 1.5, %v1624
        %v1626 = vmul.f32 %v1621, %v1625
        %vm1627 = vweird.f32 %v1556
        %vm1628 = vweird.f32 %v1621
        %vm1629 = vmor %vm1627, %vm1628
        %v1630 = vsel %vm1629, %v1621, %v1626
        %v1631 = vrsqrt.pop %v1559
        %v1632 = vmul.f32 %v1631, %v1559
        %v1633 = vmul.f32 %v1632, %v1631
        %v1634 = vmul.f32 0.5, %v1633
        %v1635 = vsub.f32 1.5, %v1634
        %v1636 = vmul.f32 %v1631, %v1635
        %vm1637 = vweird.f32 %v1559
        %vm1638 = vweird.f32 %v1631
        %vm1639 = vmor %vm1637, %vm1638
        %v1640 = vsel %vm1639, %v1631, %v1636
        %v1641 = vmul.f32 %v1504, %v1570
        %v1642 = vmul.f32 %v1505, %v1580
        %v1643 = vmul.f32 %v1506, %v1590
        %v1644 = vmul.f32 %v1507, %v1600
        %v1645 = vmul.f32 %v1508, %v1610
        %v1646 = vmul.f32 %v1509, %v1620
        %v1647 = vmul.f32 %v1510, %v1630
        %v1648 = vmul.f32 %v1511, %v1640
        %v1649 = vmul.f32 %v1641, %v850
        %v1650 = vmul.f32 %v1642, %v850
        %v1651 = vmul.f32 %v1643, %v850
        %v1652 = vmul.f32 %v1644, %v850
        %v1653 = vmul.f32 %v1645, %v850
        %v1654 = vmul.f32 %v1646, %v850
        %v1655 = vmul.f32 %v1647, %v850
        %v1656 = vmul.f32 %v1648, %v850
        %v1657 = vadd.f32 %v1649, %v861
        %v1658 = vadd.f32 %v1650, %v861
        %v1659 = vadd.f32 %v1651, %v861
        %v1660 = vadd.f32 %v1652, %v861
        %v1661 = vadd.f32 %v1653, %v861
        %v1662 = vadd.f32 %v1654, %v861
        %v1663 = vadd.f32 %v1655, %v861
        %v1664 = vadd.f32 %v1656, %v861
        %v1665 = vmax.f32 %v1657, 0.0
        %v1666 = vmax.f32 %v1658, 0.0
        %v1667 = vmax.f32 %v1659, 0.0
        %v1668 = vmax.f32 %v1660, 0.0
        %v1669 = vmax.f32 %v1661, 0.0
        %v1670 = vmax.f32 %v1662, 0.0
        %v1671 = vmax.f32 %v1663, 0.0
        %v1672 = vmax.f32 %v1664, 0.0
        %v1673 = vadd.f32 %v1665, %v1666
        %v1674 = vadd.f32 %v1673, %v1667
        %v1675 = vadd.f32 %v1674, %v1668
        %v1676 = vadd.f32 %v1675, %v1669
        %v1677 = vadd.f32 %v1676, %v1670
        %v1678 = vadd.f32 %v1677, %v1671
        %v1679 = vadd.f32 %v1678, %v1672
        %v1680 = vrot.slane %v1679, 4
        %v1681 = vadd.f32 %v1679, %v1680
        %v1682 = vrot.slane %v1681, 2
        %v1683 = vadd.f32 %v1681, %v1682
        %v1684 = vrot.slane %v1683, 1
        %v1685 = vadd.f32 %v1683, %v1684
        %v1686 = vadd.f32 %v1289, %v1685
        %s1687 = scalar_lea.vmem [#allocation2], 576
        %v1688 = vld [vmem:[%s1687 + $0xf] sm:$0xff]
        %v1689 = vld [vmem:[%s1687 + $0x17] sm:$0xff]
        %v1690 = vld [vmem:[%s1687 + $0x3f] sm:$0xff]
        %v1691 = vld [vmem:[%s1687 + $0x47] sm:$0xff]
        %v1692 = vld [vmem:[%s1687 + $0x6f] sm:$0xff]
        %v1693 = vld [vmem:[%s1687 + $0x77] sm:$0xff]
        %v1694 = vld [vmem:[%s1687 + $0x9f] sm:$0xff]
        %v1695 = vld [vmem:[%s1687 + $0xa7] sm:$0xff]
        %v1696 = vld [vmem:[%s1687 + $0xcf] sm:$0xff]
        %v1697 = vld [vmem:[%s1687 + $0xd7] sm:$0xff]
        %v1698 = vld [vmem:[%s1687 + $0xff] sm:$0xff]
        %v1699 = vld [vmem:[%s1687 + $0x107] sm:$0xff]
        %v1700 = vmul.f32 %v1688, %v494
        %v1701 = vmul.f32 %v1689, %v494
        %v1702 = vmul.f32 %v1690, %v494
        %v1703 = vmul.f32 %v1691, %v494
        %v1704 = vmul.f32 %v1692, %v494
        %v1705 = vmul.f32 %v1693, %v494
        %v1706 = vmul.f32 %v1694, %v494
        %v1707 = vmul.f32 %v1695, %v494
        %v1708 = vmul.f32 %v1690, %v503
        %v1709 = vmul.f32 %v1691, %v503
        %v1710 = vmul.f32 %v1692, %v503
        %v1711 = vmul.f32 %v1693, %v503
        %v1712 = vmul.f32 %v1694, %v503
        %v1713 = vmul.f32 %v1695, %v503
        %v1714 = vmul.f32 %v1696, %v503
        %v1715 = vmul.f32 %v1697, %v503
        %v1716 = vadd.f32 %v1700, %v1708
        %v1717 = vadd.f32 %v1701, %v1709
        %v1718 = vadd.f32 %v1702, %v1710
        %v1719 = vadd.f32 %v1703, %v1711
        %v1720 = vadd.f32 %v1704, %v1712
        %v1721 = vadd.f32 %v1705, %v1713
        %v1722 = vadd.f32 %v1706, %v1714
        %v1723 = vadd.f32 %v1707, %v1715
        %v1724 = vmul.f32 %v1692, %v520
        %v1725 = vmul.f32 %v1693, %v520
        %v1726 = vmul.f32 %v1694, %v520
        %v1727 = vmul.f32 %v1695, %v520
        %v1728 = vmul.f32 %v1696, %v520
        %v1729 = vmul.f32 %v1697, %v520
        %v1730 = vmul.f32 %v1698, %v520
        %v1731 = vmul.f32 %v1699, %v520
        %v1732 = vadd.f32 %v1716, %v1724
        %v1733 = vadd.f32 %v1717, %v1725
        %v1734 = vadd.f32 %v1718, %v1726
        %v1735 = vadd.f32 %v1719, %v1727
        %v1736 = vadd.f32 %v1720, %v1728
        %v1737 = vadd.f32 %v1721, %v1729
        %v1738 = vadd.f32 %v1722, %v1730
        %v1739 = vadd.f32 %v1723, %v1731
        %v1740 = vld [vmem:[%s1687 + $0x10] sm:$0xff]
        %v1741 = vld [vmem:[%s1687 + $0x18] sm:$0xff]
        %v1742 = vld [vmem:[%s1687 + $0x40] sm:$0xff]
        %v1743 = vld [vmem:[%s1687 + $0x48] sm:$0xff]
        %v1744 = vld [vmem:[%s1687 + $0x70] sm:$0xff]
        %v1745 = vld [vmem:[%s1687 + $0x78] sm:$0xff]
        %v1746 = vld [vmem:[%s1687 + $0xa0] sm:$0xff]
        %v1747 = vld [vmem:[%s1687 + $0xa8] sm:$0xff]
        %v1748 = vld [vmem:[%s1687 + $0xd0] sm:$0xff]
        %v1749 = vld [vmem:[%s1687 + $0xd8] sm:$0xff]
        %v1750 = vld [vmem:[%s1687 + $0x100] sm:$0xff]
        %v1751 = vld [vmem:[%s1687 + $0x108] sm:$0xff]
        %v1752 = vmul.f32 %v1740, %v549
        %v1753 = vmul.f32 %v1741, %v549
        %v1754 = vmul.f32 %v1742, %v549
        %v1755 = vmul.f32 %v1743, %v549
        %v1756 = vmul.f32 %v1744, %v549
        %v1757 = vmul.f32 %v1745, %v549
        %v1758 = vmul.f32 %v1746, %v549
        %v1759 = vmul.f32 %v1747, %v549
        %v1760 = vadd.f32 %v1732, %v1752
        %v1761 = vadd.f32 %v1733, %v1753
        %v1762 = vadd.f32 %v1734, %v1754
        %v1763 = vadd.f32 %v1735, %v1755
        %v1764 = vadd.f32 %v1736, %v1756
        %v1765 = vadd.f32 %v1737, %v1757
        %v1766 = vadd.f32 %v1738, %v1758
        %v1767 = vadd.f32 %v1739, %v1759
        %v1768 = vmul.f32 %v1742, %v566
        %v1769 = vmul.f32 %v1743, %v566
        %v1770 = vmul.f32 %v1744, %v566
        %v1771 = vmul.f32 %v1745, %v566
        %v1772 = vmul.f32 %v1746, %v566
        %v1773 = vmul.f32 %v1747, %v566
        %v1774 = vmul.f32 %v1748, %v566
        %v1775 = vmul.f32 %v1749, %v566
        %v1776 = vadd.f32 %v1760, %v1768
        %v1777 = vadd.f32 %v1761, %v1769
        %v1778 = vadd.f32 %v1762, %v1770
        %v1779 = vadd.f32 %v1763, %v1771
        %v1780 = vadd.f32 %v1764, %v1772
        %v1781 = vadd.f32 %v1765, %v1773
        %v1782 = vadd.f32 %v1766, %v1774
        %v1783 = vadd.f32 %v1767, %v1775
        %v1784 = vmul.f32 %v1744, %v583
        %v1785 = vmul.f32 %v1745, %v583
        %v1786 = vmul.f32 %v1746, %v583
        %v1787 = vmul.f32 %v1747, %v583
        %v1788 = vmul.f32 %v1748, %v583
        %v1789 = vmul.f32 %v1749, %v583
        %v1790 = vmul.f32 %v1750, %v583
        %v1791 = vmul.f32 %v1751, %v583
        %v1792 = vadd.f32 %v1776, %v1784
        %v1793 = vadd.f32 %v1777, %v1785
        %v1794 = vadd.f32 %v1778, %v1786
        %v1795 = vadd.f32 %v1779, %v1787
        %v1796 = vadd.f32 %v1780, %v1788
        %v1797 = vadd.f32 %v1781, %v1789
        %v1798 = vadd.f32 %v1782, %v1790
        %v1799 = vadd.f32 %v1783, %v1791
        %v1800 = vld [vmem:[%s1687 + $0x11] sm:$0xff]
        %v1801 = vld [vmem:[%s1687 + $0x19] sm:$0xff]
        %v1802 = vld [vmem:[%s1687 + $0x41] sm:$0xff]
        %v1803 = vld [vmem:[%s1687 + $0x49] sm:$0xff]
        %v1804 = vld [vmem:[%s1687 + $0x71] sm:$0xff]
        %v1805 = vld [vmem:[%s1687 + $0x79] sm:$0xff]
        %v1806 = vld [vmem:[%s1687 + $0xa1] sm:$0xff]
        %v1807 = vld [vmem:[%s1687 + $0xa9] sm:$0xff]
        %v1808 = vld [vmem:[%s1687 + $0xd1] sm:$0xff]
        %v1809 = vld [vmem:[%s1687 + $0xd9] sm:$0xff]
        %v1810 = vld [vmem:[%s1687 + $0x101] sm:$0xff]
        %v1811 = vld [vmem:[%s1687 + $0x109] sm:$0xff]
        %v1812 = vmul.f32 %v1800, %v612
        %v1813 = vmul.f32 %v1801, %v612
        %v1814 = vmul.f32 %v1802, %v612
        %v1815 = vmul.f32 %v1803, %v612
        %v1816 = vmul.f32 %v1804, %v612
        %v1817 = vmul.f32 %v1805, %v612
        %v1818 = vmul.f32 %v1806, %v612
        %v1819 = vmul.f32 %v1807, %v612
        %v1820 = vadd.f32 %v1792, %v1812
        %v1821 = vadd.f32 %v1793, %v1813
        %v1822 = vadd.f32 %v1794, %v1814
        %v1823 = vadd.f32 %v1795, %v1815
        %v1824 = vadd.f32 %v1796, %v1816
        %v1825 = vadd.f32 %v1797, %v1817
        %v1826 = vadd.f32 %v1798, %v1818
        %v1827 = vadd.f32 %v1799, %v1819
        %v1828 = vmul.f32 %v1802, %v629
        %v1829 = vmul.f32 %v1803, %v629
        %v1830 = vmul.f32 %v1804, %v629
        %v1831 = vmul.f32 %v1805, %v629
        %v1832 = vmul.f32 %v1806, %v629
        %v1833 = vmul.f32 %v1807, %v629
        %v1834 = vmul.f32 %v1808, %v629
        %v1835 = vmul.f32 %v1809, %v629
        %v1836 = vadd.f32 %v1820, %v1828
        %v1837 = vadd.f32 %v1821, %v1829
        %v1838 = vadd.f32 %v1822, %v1830
        %v1839 = vadd.f32 %v1823, %v1831
        %v1840 = vadd.f32 %v1824, %v1832
        %v1841 = vadd.f32 %v1825, %v1833
        %v1842 = vadd.f32 %v1826, %v1834
        %v1843 = vadd.f32 %v1827, %v1835
        %v1844 = vmul.f32 %v1804, %v646
        %v1845 = vmul.f32 %v1805, %v646
        %v1846 = vmul.f32 %v1806, %v646
        %v1847 = vmul.f32 %v1807, %v646
        %v1848 = vmul.f32 %v1808, %v646
        %v1849 = vmul.f32 %v1809, %v646
        %v1850 = vmul.f32 %v1810, %v646
        %v1851 = vmul.f32 %v1811, %v646
        %v1852 = vadd.f32 %v1836, %v1844
        %v1853 = vadd.f32 %v1837, %v1845
        %v1854 = vadd.f32 %v1838, %v1846
        %v1855 = vadd.f32 %v1839, %v1847
        %v1856 = vadd.f32 %v1840, %v1848
        %v1857 = vadd.f32 %v1841, %v1849
        %v1858 = vadd.f32 %v1842, %v1850
        %v1859 = vadd.f32 %v1843, %v1851
        %1860 = vmatpush.msra.mxu0 %v365
        %1861 = vmatpush.msra.mxu0 %v364
        %1862 = vmatpush.msra.mxu0 %v363
        %1863 = vmatpush.msra.mxu0 %v362
        %1864 = vmatpush.msra.mxu0 %v361
        %1865 = vmatpush.msra.mxu0 %v360
        %1866 = vmatpush.msra.mxu0 %v359
        %1867 = vmatpush.msra.mxu0 %v358
        %1868 = vmatpush.msra.mxu0 %v357
        %1869 = vmatpush.msra.mxu0 %v356
        %1870 = vmatpush.msra.mxu0 %v355
        %1871 = vmatpush.msra.mxu0 %v354
        %1872 = vmatpush.msra.mxu0 %v353
        %1873 = vmatpush.msra.mxu0 %v352
        %1874 = vmatpush.msra.mxu0 %v351
        %1875 = vmatpush.msra.mxu0 %v350
        %1876 = vmatmul.f32.gmra.mxu0 %v1852
        %v1877 = vpop.f32.mrf.mxu0
        %v1878 = vadd.f32 0.0, %v1877
        %1879 = vmatmul.f32.gmra.mxu0 %v1853
        %v1880 = vpop.f32.mrf.mxu0
        %v1881 = vadd.f32 0.0, %v1880
        %1882 = vmatmul.f32.gmra.mxu0 %v1854
        %v1883 = vpop.f32.mrf.mxu0
        %v1884 = vadd.f32 0.0, %v1883
        %1885 = vmatmul.f32.gmra.mxu0 %v1855
        %v1886 = vpop.f32.mrf.mxu0
        %v1887 = vadd.f32 0.0, %v1886
        %1888 = vmatmul.f32.gmra.mxu0 %v1856
        %v1889 = vpop.f32.mrf.mxu0
        %v1890 = vadd.f32 0.0, %v1889
        %1891 = vmatmul.f32.gmra.mxu0 %v1857
        %v1892 = vpop.f32.mrf.mxu0
        %v1893 = vadd.f32 0.0, %v1892
        %1894 = vmatmul.f32.gmra.mxu0 %v1858
        %v1895 = vpop.f32.mrf.mxu0
        %v1896 = vadd.f32 0.0, %v1895
        %1897 = vmatmul.f32.gmra.mxu0 %v1859
        %v1898 = vpop.f32.mrf.mxu0
        %v1899 = vadd.f32 0.0, %v1898
        %1900 = vdwg.mxu0
        %v1901 = vsub.f32 %v1852, %v1878
        %v1902 = vsub.f32 %v1853, %v1881
        %v1903 = vsub.f32 %v1854, %v1884
        %v1904 = vsub.f32 %v1855, %v1887
        %v1905 = vsub.f32 %v1856, %v1890
        %v1906 = vsub.f32 %v1857, %v1893
        %v1907 = vsub.f32 %v1858, %v1896
        %v1908 = vsub.f32 %v1859, %v1899
        %v1909 = vmul.f32 %v1901, %v1901
        %v1910 = vmul.f32 %v1902, %v1902
        %v1911 = vmul.f32 %v1903, %v1903
        %v1912 = vmul.f32 %v1904, %v1904
        %v1913 = vmul.f32 %v1905, %v1905
        %v1914 = vmul.f32 %v1906, %v1906
        %v1915 = vmul.f32 %v1907, %v1907
        %v1916 = vmul.f32 %v1908, %v1908
        %1917 = vmatpush.msra.mxu0 %v365
        %1918 = vmatpush.msra.mxu0 %v364
        %1919 = vmatpush.msra.mxu0 %v363
        %1920 = vmatpush.msra.mxu0 %v362
        %1921 = vmatpush.msra.mxu0 %v361
        %1922 = vmatpush.msra.mxu0 %v360
        %1923 = vmatpush.msra.mxu0 %v359
        %1924 = vmatpush.msra.mxu0 %v358
        %1925 = vmatpush.msra.mxu0 %v357
        %1926 = vmatpush.msra.mxu0 %v356
        %1927 = vmatpush.msra.mxu0 %v355
        %1928 = vmatpush.msra.mxu0 %v354
        %1929 = vmatpush.msra.mxu0 %v353
        %1930 = vmatpush.msra.mxu0 %v352
        %1931 = vmatpush.msra.mxu0 %v351
        %1932 = vmatpush.msra.mxu0 %v350
        %1933 = vmatmul.f32.gmra.mxu0 %v1909
        %v1934 = vpop.f32.mrf.mxu0
        %v1935 = vadd.f32 1e-05, %v1934
        %1936 = vmatmul.f32.gmra.mxu0 %v1910
        %v1937 = vpop.f32.mrf.mxu0
        %v1938 = vadd.f32 1e-05, %v1937
        %1939 = vmatmul.f32.gmra.mxu0 %v1911
        %v1940 = vpop.f32.mrf.mxu0
        %v1941 = vadd.f32 1e-05, %v1940
        %1942 = vmatmul.f32.gmra.mxu0 %v1912
        %v1943 = vpop.f32.mrf.mxu0
        %v1944 = vadd.f32 1e-05, %v1943
        %1945 = vmatmul.f32.gmra.mxu0 %v1913
        %v1946 = vpop.f32.mrf.mxu0
        %v1947 = vadd.f32 1e-05, %v1946
        %1948 = vmatmul.f32.gmra.mxu0 %v1914
        %v1949 = vpop.f32.mrf.mxu0
        %v1950 = vadd.f32 1e-05, %v1949
        %1951 = vmatmul.f32.gmra.mxu0 %v1915
        %v1952 = vpop.f32.mrf.mxu0
        %v1953 = vadd.f32 1e-05, %v1952
        %1954 = vmatmul.f32.gmra.mxu0 %v1916
        %v1955 = vpop.f32.mrf.mxu0
        %v1956 = vadd.f32 1e-05, %v1955
        %1957 = vdwg.mxu0
        %v1958 = vrsqrt.pop %v1935
        %v1959 = vmul.f32 %v1958, %v1935
        %v1960 = vmul.f32 %v1959, %v1958
        %v1961 = vmul.f32 0.5, %v1960
        %v1962 = vsub.f32 1.5, %v1961
        %v1963 = vmul.f32 %v1958, %v1962
        %vm1964 = vweird.f32 %v1935
        %vm1965 = vweird.f32 %v1958
        %vm1966 = vmor %vm1964, %vm1965
        %v1967 = vsel %vm1966, %v1958, %v1963
        %v1968 = vrsqrt.pop %v1938
        %v1969 = vmul.f32 %v1968, %v1938
        %v1970 = vmul.f32 %v1969, %v1968
        %v1971 = vmul.f32 0.5, %v1970
        %v1972 = vsub.f32 1.5, %v1971
        %v1973 = vmul.f32 %v1968, %v1972
        %vm1974 = vweird.f32 %v1938
        %vm1975 = vweird.f32 %v1968
        %vm1976 = vmor %vm1974, %vm1975
        %v1977 = vsel %vm1976, %v1968, %v1973
        %v1978 = vrsqrt.pop %v1941
        %v1979 = vmul.f32 %v1978, %v1941
        %v1980 = vmul.f32 %v1979, %v1978
        %v1981 = vmul.f32 0.5, %v1980
        %v1982 = vsub.f32 1.5, %v1981
        %v1983 = vmul.f32 %v1978, %v1982
        %vm1984 = vweird.f32 %v1941
        %vm1985 = vweird.f32 %v1978
        %vm1986 = vmor %vm1984, %vm1985
        %v1987 = vsel %vm1986, %v1978, %v1983
        %v1988 = vrsqrt.pop %v1944
        %v1989 = vmul.f32 %v1988, %v1944
        %v1990 = vmul.f32 %v1989, %v1988
        %v1991 = vmul.f32 0.5, %v1990
        %v1992 = vsub.f32 1.5, %v1991
        %v1993 = vmul.f32 %v1988, %v1992
        %vm1994 = vweird.f32 %v1944
        %vm1995 = vweird.f32 %v1988
        %vm1996 = vmor %vm1994, %vm1995
        %v1997 = vsel %vm1996, %v1988, %v1993
        %v1998 = vrsqrt.pop %v1947
        %v1999 = vmul.f32 %v1998, %v1947
        %v2000 = vmul.f32 %v1999, %v1998
        %v2001 = vmul.f32 0.5, %v2000
        %v2002 = vsub.f32 1.5, %v2001
        %v2003 = vmul.f32 %v1998, %v2002
        %vm2004 = vweird.f32 %v1947
        %vm2005 = vweird.f32 %v1998
        %vm2006 = vmor %vm2004, %vm2005
        %v2007 = vsel %vm2006, %v1998, %v2003
        %v2008 = vrsqrt.pop %v1950
        %v2009 = vmul.f32 %v2008, %v1950
        %v2010 = vmul.f32 %v2009, %v2008
        %v2011 = vmul.f32 0.5, %v2010
        %v2012 = vsub.f32 1.5, %v2011
        %v2013 = vmul.f32 %v2008, %v2012
        %vm2014 = vweird.f32 %v1950
        %vm2015 = vweird.f32 %v2008
        %vm2016 = vmor %vm2014, %vm2015
        %v2017 = vsel %vm2016, %v2008, %v2013
        %v2018 = vrsqrt.pop %v1953
        %v2019 = vmul.f32 %v2018, %v1953
        %v2020 = vmul.f32 %v2019, %v2018
        %v2021 = vmul.f32 0.5, %v2020
        %v2022 = vsub.f32 1.5, %v2021
        %v2023 = vmul.f32 %v2018, %v2022
        %vm2024 = vweird.f32 %v1953
        %vm2025 = vweird.f32 %v2018
        %vm2026 = vmor %vm2024, %vm2025
        %v2027 = vsel %vm2026, %v2018, %v2023
        %v2028 = vrsqrt.pop %v1956
        %v2029 = vmul.f32 %v2028, %v1956
        %v2030 = vmul.f32 %v2029, %v2028
        %v2031 = vmul.f32 0.5, %v2030
        %v2032 = vsub.f32 1.5, %v2031
        %v2033 = vmul.f32 %v2028, %v2032
        %vm2034 = vweird.f32 %v1956
        %vm2035 = vweird.f32 %v2028
        %vm2036 = vmor %vm2034, %vm2035
        %v2037 = vsel %vm2036, %v2028, %v2033
        %v2038 = vmul.f32 %v1901, %v1967
        %v2039 = vmul.f32 %v1902, %v1977
        %v2040 = vmul.f32 %v1903, %v1987
        %v2041 = vmul.f32 %v1904, %v1997
        %v2042 = vmul.f32 %v1905, %v2007
        %v2043 = vmul.f32 %v1906, %v2017
        %v2044 = vmul.f32 %v1907, %v2027
        %v2045 = vmul.f32 %v1908, %v2037
        %v2046 = vmul.f32 %v2038, %v850
        %v2047 = vmul.f32 %v2039, %v850
        %v2048 = vmul.f32 %v2040, %v850
        %v2049 = vmul.f32 %v2041, %v850
        %v2050 = vmul.f32 %v2042, %v850
        %v2051 = vmul.f32 %v2043, %v850
        %v2052 = vmul.f32 %v2044, %v850
        %v2053 = vmul.f32 %v2045, %v850
        %v2054 = vadd.f32 %v2046, %v861
        %v2055 = vadd.f32 %v2047, %v861
        %v2056 = vadd.f32 %v2048, %v861
        %v2057 = vadd.f32 %v2049, %v861
        %v2058 = vadd.f32 %v2050, %v861
        %v2059 = vadd.f32 %v2051, %v861
        %v2060 = vadd.f32 %v2052, %v861
        %v2061 = vadd.f32 %v2053, %v861
        %v2062 = vmax.f32 %v2054, 0.0
        %v2063 = vmax.f32 %v2055, 0.0
        %v2064 = vmax.f32 %v2056, 0.0
        %v2065 = vmax.f32 %v2057, 0.0
        %v2066 = vmax.f32 %v2058, 0.0
        %v2067 = vmax.f32 %v2059, 0.0
        %v2068 = vmax.f32 %v2060, 0.0
        %v2069 = vmax.f32 %v2061, 0.0
        %v2070 = vadd.f32 %v2062, %v2063
        %v2071 = vadd.f32 %v2070, %v2064
        %v2072 = vadd.f32 %v2071, %v2065
        %v2073 = vadd.f32 %v2072, %v2066
        %v2074 = vadd.f32 %v2073, %v2067
        %v2075 = vadd.f32 %v2074, %v2068
        %v2076 = vadd.f32 %v2075, %v2069
        %v2077 = vrot.slane %v2076, 4
        %v2078 = vadd.f32 %v2076, %v2077
        %v2079 = vrot.slane %v2078, 2
        %v2080 = vadd.f32 %v2078, %v2079
        %v2081 = vrot.slane %v2080, 1
        %v2082 = vadd.f32 %v2080, %v2081
        %v2083 = vadd.f32 %v1686, %v2082
        %v2084 = vmul.f32 %v2083, 0.00390625
        %v2085 = vld [vmem:[#allocation9] sm:$0xff]
        %v2086 = vld [vmem:[#allocation9 + $0x8] sm:$0xff]
        %v2087 = vld [vmem:[#allocation9 + $0x10] sm:$0xff]
        %v2088 = vld [vmem:[#allocation9 + $0x18] sm:$0xff]
        %v2089 = vld [vmem:[#allocation9 + $0x20] sm:$0xff]
        %v2090 = vld [vmem:[#allocation9 + $0x28] sm:$0xff]
        %v2091 = vld [vmem:[#allocation9 + $0x30] sm:$0xff]
        %v2092 = vld [vmem:[#allocation9 + $0x38] sm:$0xff]
        %v2093 = vld [vmem:[#allocation9 + $0x40] sm:$0xff]
        %v2094 = vld [vmem:[#allocation9 + $0x48] sm:$0xff]
        %v2095 = vld [vmem:[#allocation9 + $0x50] sm:$0xff]
        %v2096 = vld [vmem:[#allocation9 + $0x58] sm:$0xff]
        %v2097 = vld [vmem:[#allocation9 + $0x60] sm:$0xff]
        %v2098 = vld [vmem:[#allocation9 + $0x68] sm:$0xff]
        %v2099 = vld [vmem:[#allocation9 + $0x70] sm:$0xff]
        %v2100 = vld [vmem:[#allocation9 + $0x78] sm:$0xff]
        %v2101 = vld [vmem:[%s6] sm:$0x1]
        %2102 = vmatpush.msra.mxu0 %v2100
        %2103 = vmatpush.msra.mxu0 %v2099
        %2104 = vmatpush.msra.mxu0 %v2098
        %2105 = vmatpush.msra.mxu0 %v2097
        %2106 = vmatpush.msra.mxu0 %v2096
        %2107 = vmatpush.msra.mxu0 %v2095
        %2108 = vmatpush.msra.mxu0 %v2094
        %2109 = vmatpush.msra.mxu0 %v2093
        %2110 = vmatpush.msra.mxu0 %v2092
        %2111 = vmatpush.msra.mxu0 %v2091
        %2112 = vmatpush.msra.mxu0 %v2090
        %2113 = vmatpush.msra.mxu0 %v2089
        %2114 = vmatpush.msra.mxu0 %v2088
        %2115 = vmatpush.msra.mxu0 %v2087
        %2116 = vmatpush.msra.mxu0 %v2086
        %2117 = vmatpush.msra.mxu0 %v2085
        %2118 = vmatmul.f32.gmra.mxu0 %v2084
        %v2119 = vpop.f32.mrf.mxu0
        %v2120 = vadd.f32 %v2101, %v2119
        %2121 = vdwg.mxu0
        %v2122 = vlaneseq
        %v2123 = vand.u32 %v2122, 127
        %v2124 = vxor.u32 %v2120, 2147483648
        %v2125 = vmul.f32 %v2124, 1.442695
        %v2126 = vpow.pop %v2125
        %v2127 = vadd.f32 %v2126, 1.0
        %v2128 = vrcp.pop %v2127
        %v2129 = vmul.f32 %v2127, %v2128
        %v2130 = vsub.f32 1.0, %v2129
        %v2131 = vmul.f32 %v2128, %v2130
        %v2132 = vadd.f32 %v2128, %v2131
        %vm2133 = vweird.f32 %v2127
        %vm2134 = vweird.f32 %v2128
        %vm2135 = vmor %vm2133, %vm2134
        %v2136 = vsel %vm2135, %v2128, %v2132
        %v2137 = vand.u32 2147483647, %v2127
        %vm2138 = vcmp.eq.f32.partialorder %v2137, 8.507059e+37
        %v2139 = vand.u32 %v2127, 2147483648
        %v2140 = vor.u32 1.1754944e-38, %v2139
        %v2141 = vsel %vm2138, %v2140, %v2136
        %v2142 = vmul.f32 1.0, %v2141
        %v2143 = vand.u32 2147483647, %v2120
        %v2144 = vadd.f32 %v2143, 1.0
        %v2145 = vrcp.pop %v2144
        %v2146 = vmul.f32 %v2144, %v2145
        %v2147 = vsub.f32 1.0, %v2146
        %v2148 = vmul.f32 %v2145, %v2147
        %v2149 = vadd.f32 %v2145, %v2148
        %vm2150 = vweird.f32 %v2144
        %vm2151 = vweird.f32 %v2145
        %vm2152 = vmor %vm2150, %vm2151
        %v2153 = vsel %vm2152, %v2145, %v2149
        %v2154 = vand.u32 2147483647, %v2144
        %vm2155 = vcmp.eq.f32.partialorder %v2154, 8.507059e+37
        %v2156 = vand.u32 %v2144, 2147483648
        %v2157 = vor.u32 1.1754944e-38, %v2156
        %v2158 = vsel %vm2155, %v2157, %v2153
        %v2159 = vmul.f32 %v2120, %v2158
        %v2160 = vmul.f32 %v2159, 0.6981317
        %vm2161 = vcmp.lt.s32.totalorder %v2123, 32
        %v2162 = vsel %vm2161, %v2142, %v2160
        %2163 = vst [vmem:[%s347] sm:$0x1] %v2162
        %s2164 = sand.u32 %s186, 1
        %s2165 = scalar_lea.sflag [#allocation5], %s2164
        %s2166 = sand.u32 %s186, 1
        %s2167 = scalar_lea.vmem [#allocation11], %s2166
        // Predicated region
        $region65: #{tpu_custom_call.1} parent=47 // pred_check
          %p2168 = pneg %p196
        $region66: #{tpu_custom_call.1} parent=47 // pred_check_branch
          %2170 = sbr.rel (%p2168) target = $region68
        $region67: #{tpu_custom_call.1} parent=47 // pred_region
          %2172 = vsyncadd %s2165, 0
          %s2173 = scalar_lea.hbm %s7, %s26
          %s2175 = sshll.u32 %s2167, 4
          %s2176 = int_to_ptr.vmem [resolvable:$true] %s2175
          %s2177 = sshll.u32 %s2173, 4
          %s2178 = int_to_ptr.hbm [resolvable:$true] %s2177
          %2180 = dma.vmem_to_hbm [thread:$0]  %s2176, 16, %s2178, %s2165
        $region68: #{tpu_custom_call.1} parent=47 // pred_fallthru
          _
      $region48: #{tpu_custom_call.1} parent=5 // pred_fallthru
        _
      %p2181 = scmp.le.s32.totalorder 2, %s21
      // Predicated region
      $region69: #{tpu_custom_call.1} parent=5 // pred_check
        %p2182 = pneg %p2181
      $region70: #{tpu_custom_call.1} parent=5 // pred_check_branch
        %2184 = sbr.rel (%p2182) target = $region72
      $region71: #{tpu_custom_call.1} parent=5 // pred_region
        %s2185 = ssub.s32 %s21, 2
        // Predicated region
        $region73: #{tpu_custom_call.1} parent=71 // pred_check
          %p2186 = pneg %p202
        $region74: #{tpu_custom_call.1} parent=71 // pred_check_branch
          %2188 = sbr.rel (%p2186) target = $region76
        $region75: #{tpu_custom_call.1} parent=71 // pred_region
          %s2189 = sand.u32 %s187, 1
          %s2190 = scalar_lea.sflag [#allocation5], %s2189
          %s2191 = sand.u32 %s187, 1
          %s2192 = scalar_lea.vmem [#allocation11], %s2191
          %2194 = dma.done %s2190, 16
        $region76: #{tpu_custom_call.1} parent=71 // pred_fallthru
          _
      $region72: #{tpu_custom_call.1} parent=5 // pred_fallthru
        _
    $region6: #{tpu_custom_call.1} parent=1 // loop_footer
      %s25 = sadd.s32 1, %s21
    $region7: #{tpu_custom_call.1} parent=1 // loop_footer_branch
      %20 = sbr.rel target = $region3
    $region8: #{tpu_custom_call.1} parent=1 // loop_exit
      _
    %2195 = vsyncpa [#allocation4], 1
    %s2196 = scalar_lea.sflag [#allocation4], 1
    %2197 = vsyncpa %s2196, 1
    %2198 = vsyncpa [#allocation7], 1
    %2199 = vsyncpa [#allocation10], 1
    %2200 = vsyncpa [#allocation5], 1
    %s2201 = scalar_lea.sflag [#allocation5], 1
    %2202 = vsyncpa %s2201, 1

</llo_original>
